<compile_context>
chip_gen: v5e
topology: v5e:2x2
jax: 0.10.0
libtpu: 0.0.40
codegen_flags: <defaults>
</compile_context>

<pallas_src>
import math

import numpy as np
import jax
import jax.numpy as jnp
from jax.experimental import pallas as pl
from jax.experimental.pallas import tpu as pltpu


# ----------------------------------------------------------------------------
# Pallas kernel: one grid step = one direction; full sequence in VMEM.
# ----------------------------------------------------------------------------
def _gru_seq_kernel(len_ref, gx_ref, whh_ref, bhh_ref, out_ref):
    """Sequential GRU hidden recurrence for one direction.

    len_ref: (B, 1) int32   per-sequence valid lengths
    gx_ref : (T, B, 3*Hp)   precomputed x @ W_ih^T + b_ih (gate-padded layout)
    whh_ref: (Hp, 3*Hp)     W_hh^T (gate-padded cols, zero rows beyond real H)
    bhh_ref: (1, 3*Hp)      b_hh  (gate-padded)
    out_ref: (T, B, Hp)     per-direction output (padded positions written as 0)
    """
    T, B, Hp = out_ref.shape
    reverse = pl.program_id(0)          # 0 = forward, 1 = backward direction

    def step(s, h):
        # Backward direction walks t = T-1 .. 0; at padded steps (t >= length)
        # h stays frozen at 0, so the recurrence effectively starts at t = len-1.
        t = jnp.where(reverse == 1, T - 1 - s, s)
        gx_t = gx_ref[t]                                                # (B, 3Hp)
        gh = jnp.dot(h, whh_ref[...],
                     preferred_element_type=jnp.float32) + bhh_ref[...]
        # PyTorch gate order [r, z, n]; slices are 128-lane aligned (Hp = k*128).
        r = jax.nn.sigmoid(gx_t[:, 0:Hp] + gh[:, 0:Hp])
        z = jax.nn.sigmoid(gx_t[:, Hp:2 * Hp] + gh[:, Hp:2 * Hp])
        n = jnp.tanh(gx_t[:, 2 * Hp:3 * Hp] + r * gh[:, 2 * Hp:3 * Hp])
        h_new = (1.0 - z) * n + z * h
        valid = t < len_ref[...]                                        # (B, 1)
        out_ref[t] = jnp.where(valid, h_new, 0.0)      # zero-pad beyond length
        return jnp.where(valid, h_new, h)              # freeze h on padded steps

    jax.lax.fori_loop(0, T, step, jnp.zeros((B, Hp), jnp.float32), unroll=True)


# ----------------------------------------------------------------------------
# Weight layout helpers: gate-pad so each gate owns a full 128-lane block.
# ----------------------------------------------------------------------------
def _pad_gate_cols(w_t, H, Hp):
    """(rows, 3H) -> (rows, 3Hp): gate g moved to lanes [g*Hp, g*Hp + H)."""
    rows = w_t.shape[0]
    out = jnp.zeros((rows, 3 * Hp), jnp.float32)
    for g in range(3):
        out = out.at[:, g * Hp:g * Hp + H].set(w_t[:, g * H:(g + 1) * H])
    return out


def _pad_gate_vec(b, H, Hp):
    out = jnp.zeros((3 * Hp,), jnp.float32)
    for g in range(3):
        out = out.at[g * Hp:g * Hp + H].set(b[g * H:(g + 1) * H])
    return out


# ----------------------------------------------------------------------------
# Model wrapper (matches the PyTorch RNN module forward semantics).
# ----------------------------------------------------------------------------
class RNNPallas:
    def __init__(self, d_in, d_out, n_layers=1, bi=True, dropout=0.2,
                 n_to_1=False, key=jax.random.PRNGKey(0)):
        # TODO(synk): inter-layer dropout (training mode) not implemented; with
        # n_layers=1 (as used here) PyTorch's GRU ignores it anyway.
        self.d_in = d_in
        self.d_out = d_out
        self.n_layers = n_layers
        self.n_directions = 2 if bi else 1
        self.n_to_1 = n_to_1
        self.Hp = ((d_out + 127) // 128) * 128       # lane-padded hidden size

        H, Hp = d_out, self.Hp
        k = 1.0 / math.sqrt(d_out)
        self.layers = []   # kernel-layout params (padded/transposed/stacked)
        self.raw = []      # raw PyTorch-layout params (for the numpy reference)
        for layer in range(n_layers):
            layer_in = d_in if layer == 0 else d_out * self.n_directions
            wih_p, whh_p, bih_p, bhh_p, raw_dirs = [], [], [], [], []
            for _ in range(self.n_directions):
                key, k1, k2, k3, k4 = jax.random.split(key, 5)
                w_ih = jax.random.uniform(k1, (3 * H, layer_in), jnp.float32, -k, k)
                w_hh = jax.random.uniform(k2, (3 * H, H), jnp.float32, -k, k)
                b_ih = jax.random.uniform(k3, (3 * H,), jnp.float32, -k, k)
                b_hh = jax.random.uniform(k4, (3 * H,), jnp.float32, -k, k)
                raw_dirs.append((w_ih, w_hh, b_ih, b_hh))
                wih_p.append(_pad_gate_cols(w_ih.T, H, Hp))                    # (In, 3Hp)
                whh_p.append(jnp.zeros((Hp, 3 * Hp), jnp.float32)
                             .at[:H].set(_pad_gate_cols(w_hh.T, H, Hp)))       # (Hp, 3Hp)
                bih_p.append(_pad_gate_vec(b_ih, H, Hp))                       # (3Hp,)
                bhh_p.append(_pad_gate_vec(b_hh, H, Hp).reshape(1, 3 * Hp))    # (1, 3Hp)
            self.layers.append(dict(
                wih=jnp.stack(wih_p), whh=jnp.stack(whh_p),
                bih=jnp.stack(bih_p), bhh=jnp.stack(bhh_p)))
            self.raw.append(raw_dirs)

    def __call__(self, x, x_len):
        x = jnp.asarray(x, jnp.float32)
        lengths = jnp.asarray(x_len, jnp.int32)
        B, T, _ = x.shape
        H, Hp, ndir = self.d_out, self.Hp, self.n_directions
        len2d = lengths.reshape(B, 1)

        layer_in = x
        for lp in self.layers:
            # (1) Input projection hoisted out of the recurrence: one big matmul
            #     over all timesteps & directions, bias folded in.
            x_tbd = jnp.transpose(layer_in, (1, 0, 2))                  # (T, B, In)
            gx = (jnp.einsum('tbi,nih->ntbh', x_tbd, lp['wih'])
                  + lp['bih'][:, None, None, :])                        # (ndir, T, B, 3Hp)

            # (2) Sequential recurrence: one kernel call for both directions.
            out = pl.pallas_call(
                _gru_seq_kernel,
                out_shape=jax.ShapeDtypeStruct((ndir, T, B, Hp), jnp.float32),
                grid_spec=pltpu.PrefetchScalarGridSpec(
                    num_scalar_prefetch=0,
                    grid=(ndir,),
                    in_specs=[
                        pl.BlockSpec((B, 1), lambda d: (0, 0)),                      # lengths
                        pl.BlockSpec((None, T, B, 3 * Hp), lambda d: (d, 0, 0, 0)),  # gx
                        pl.BlockSpec((None, Hp, 3 * Hp), lambda d: (d, 0, 0)),       # W_hh^T
                        pl.BlockSpec((None, 1, 3 * Hp), lambda d: (d, 0, 0)),        # b_hh
                    ],
                    out_specs=pl.BlockSpec((None, T, B, Hp), lambda d: (d, 0, 0, 0)),
                ),
                compiler_params=pltpu.CompilerParams(
                    dimension_semantics=("parallel",)),   # fwd/bwd on v7x's 2 TCs
            )(len2d, gx, lp['whh'], lp['bhh'])

            out = out[..., :H]                                          # strip lane pad
            layer_in = jnp.transpose(out, (2, 1, 0, 3)).reshape(B, T, ndir * H)

        if self.n_to_1:
            # last valid output item per sequence (== last_item_from_packed)
            idx = jnp.clip(lengths - 1, 0, T - 1)
            return jnp.take_along_axis(layer_in, idx[:, None, None], axis=1)[:, 0, :]
        return layer_in  # (B, T, n_directions * d_out), zero-padded beyond lengths


# ----------------------------------------------------------------------------
# Plain numpy GRU reference with packed-sequence semantics (for validation).
# ----------------------------------------------------------------------------
def _gru_reference(x, lengths, raw_layers, n_dir, H):
    x = np.asarray(x, np.float32)
    B, T, _ = x.shape
    sig = lambda v: 1.0 / (1.0 + np.exp(-v))
    layer_in = x
    for raw_dirs in raw_layers:
        out = np.zeros((B, T, n_dir * H), np.float32)
        for d in range(n_dir):
            w_ih, w_hh, b_ih, b_hh = (np.asarray(a, np.float32) for a in raw_dirs[d])
            for b in range(B):
                L = int(lengths[b])
                h = np.zeros((H,), np.float32)
                ts = range(L) if d == 0 else range(L - 1, -1, -1)
                for t in ts:
                    gi = w_ih @ layer_in[b, t] + b_ih
                    gh = w_hh @ h + b_hh
                    r = sig(gi[:H] + gh[:H])
                    z = sig(gi[H:2 * H] + gh[H:2 * H])
                    n = np.tanh(gi[2 * H:] + r * gh[2 * H:])
                    h = (1.0 - z) * n + z * h
                    out[b, t, d * H:(d + 1) * H] = h
        layer_in = out
    return layer_in


if __name__ == "__main__":
    B, T, D_IN, D_OUT = 2, 8, 8, 32
    key = jax.random.PRNGKey(0)
    kx, kp = jax.random.split(key)
    x = jax.random.normal(kx, (B, T, D_IN), jnp.float32)
    x_len = jnp.array([8, 5], jnp.int32)

    model = RNNPallas(d_in=D_IN, d_out=D_OUT, n_layers=1, bi=True,
                      dropout=0.2, n_to_1=False, key=kp)
    out = jax.block_until_ready(model(x, x_len))
    assert out.shape == (B, T, 2 * D_OUT)

    # Correctness vs a plain numpy GRU with packed-sequence semantics
    # (loose tolerance: TPU's default f32 matmul precision uses bf16 MXU passes).
    ref = _gru_reference(np.asarray(x), np.asarray(x_len), model.raw,
                         model.n_directions, D_OUT)
    np.testing.assert_allclose(np.asarray(out), ref, rtol=1e-2, atol=1e-2)
    # Padded positions must be exactly zero (pad_packed_sequence semantics).
    assert float(jnp.abs(out[1, 5:, :]).max()) == 0.0

    print("KERNEL_OK")
</pallas_src>

<mosaic_0001>
module attributes {stable_mosaic.version = 11 : i64} {
  func.func @_gru_seq_kernel(%arg0: i32, %arg1: memref<2x1xi32, #tpu.memory_space<vmem>>, %arg2: memref<1x8x2x384xf32, #tpu.memory_space<vmem>>, %arg3: memref<1x128x384xf32, #tpu.memory_space<vmem>>, %arg4: memref<1x1x384xf32, #tpu.memory_space<vmem>>, %arg5: memref<1x8x2x128xf32, #tpu.memory_space<vmem>>) attributes {dimension_semantics = [#tpu.dimension_semantics<parallel>], iteration_bounds = array<i64: 2>, scalar_prefetch = 0 : i64, scratch_operands = 0 : i64, tpu.core_type = #tpu.core_type<tc>, window_params = [{pipeline_mode = #tpu.pipeline_mode<synchronous>, transform_indices = @transform_0, window_bounds = array<i64: 2, 1>}, {transform_indices = @transform_1, window_bounds = array<i64: 1, 8, 2, 384>}, {transform_indices = @transform_2, window_bounds = array<i64: 1, 128, 384>}, {transform_indices = @transform_3, window_bounds = array<i64: 1, 1, 384>}, {transform_indices = @transform_4, window_bounds = array<i64: 1, 8, 2, 128>}]} {
    %cst = arith.constant 0.000000e+00 : f32
    %0 = vector.broadcast %cst : f32 to vector<2x128xf32>
    %c0_i32 = arith.constant 0 : i32
    %c1_i32 = arith.constant 1 : i32
    %1 = arith.cmpi eq, %arg0, %c1_i32 : i32
    %c7_i32 = arith.constant 7 : i32
    %2 = arith.subi %c7_i32, %c0_i32 : i32
    %3 = arith.select %1, %2, %c0_i32 : i32
    %c0 = arith.constant 0 : index
    %4 = arith.index_cast %3 : i32 to index
    %c0_0 = arith.constant 0 : index
    %c0_1 = arith.constant 0 : index
    %5 = vector.load %arg2[%c0, %4, %c0_0, %c0_1] : memref<1x8x2x384xf32, #tpu.memory_space<vmem>>, vector<1x1x2x384xf32>
    %6 = vector.shape_cast %5 : vector<1x1x2x384xf32> to vector<2x384xf32>
    %c0_2 = arith.constant 0 : index
    %c0_3 = arith.constant 0 : index
    %c0_4 = arith.constant 0 : index
    %7 = vector.load %arg3[%c0_2, %c0_3, %c0_4] : memref<1x128x384xf32, #tpu.memory_space<vmem>>, vector<1x128x384xf32>
    %8 = vector.shape_cast %7 : vector<1x128x384xf32> to vector<128x384xf32>
    %cst_5 = arith.constant dense<0.000000e+00> : vector<2x384xf32>
    %9 = tpu.matmul %0, %8, %cst_5 {dimension_numbers = #tpu.dot_dimension_numbers<[1], [0], [0], [1], [0, 0, 1, 1], [], []>} : vector<2x128xf32>, vector<128x384xf32>, vector<2x384xf32> -> vector<2x384xf32>
    %c0_6 = arith.constant 0 : index
    %c0_7 = arith.constant 0 : index
    %c0_8 = arith.constant 0 : index
    %10 = vector.load %arg4[%c0_6, %c0_7, %c0_8] : memref<1x1x384xf32, #tpu.memory_space<vmem>>, vector<1x1x384xf32>
    %11 = vector.shape_cast %10 : vector<1x1x384xf32> to vector<1x384xf32>
    %12 = vector.broadcast %11 : vector<1x384xf32> to vector<2x384xf32>
    %13 = arith.addf %9, %12 : vector<2x384xf32>
    %14 = vector.extract_strided_slice %6 {offsets = [0, 0], sizes = [2, 128], strides = [1, 1]} : vector<2x384xf32> to vector<2x128xf32>
    %15 = vector.extract_strided_slice %13 {offsets = [0, 0], sizes = [2, 128], strides = [1, 1]} : vector<2x384xf32> to vector<2x128xf32>
    %16 = arith.addf %14, %15 : vector<2x128xf32>
    %17 = arith.negf %16 : vector<2x128xf32>
    %18 = math.exp %17 : vector<2x128xf32>
    %cst_9 = arith.constant 1.000000e+00 : f32
    %19 = vector.broadcast %cst_9 : f32 to vector<2x128xf32>
    %20 = arith.addf %19, %18 : vector<2x128xf32>
    %21 = arith.divf %19, %20 : vector<2x128xf32>
    %22 = vector.extract_strided_slice %6 {offsets = [0, 128], sizes = [2, 128], strides = [1, 1]} : vector<2x384xf32> to vector<2x128xf32>
    %23 = vector.extract_strided_slice %13 {offsets = [0, 128], sizes = [2, 128], strides = [1, 1]} : vector<2x384xf32> to vector<2x128xf32>
    %24 = arith.addf %22, %23 : vector<2x128xf32>
    %25 = arith.negf %24 : vector<2x128xf32>
    %26 = math.exp %25 : vector<2x128xf32>
    %cst_10 = arith.constant 1.000000e+00 : f32
    %27 = vector.broadcast %cst_10 : f32 to vector<2x128xf32>
    %28 = arith.addf %27, %26 : vector<2x128xf32>
    %29 = arith.divf %27, %28 : vector<2x128xf32>
    %30 = vector.extract_strided_slice %6 {offsets = [0, 256], sizes = [2, 128], strides = [1, 1]} : vector<2x384xf32> to vector<2x128xf32>
    %31 = vector.extract_strided_slice %13 {offsets = [0, 256], sizes = [2, 128], strides = [1, 1]} : vector<2x384xf32> to vector<2x128xf32>
    %32 = arith.mulf %21, %31 : vector<2x128xf32>
    %33 = arith.addf %30, %32 : vector<2x128xf32>
    %34 = math.tanh %33 : vector<2x128xf32>
    %cst_11 = arith.constant 1.000000e+00 : f32
    %35 = vector.broadcast %cst_11 : f32 to vector<2x128xf32>
    %36 = arith.subf %35, %29 : vector<2x128xf32>
    %37 = arith.mulf %36, %34 : vector<2x128xf32>
    %38 = arith.mulf %29, %0 : vector<2x128xf32>
    %39 = arith.addf %37, %38 : vector<2x128xf32>
    %c0_12 = arith.constant 0 : index
    %c0_13 = arith.constant 0 : index
    %40 = vector.load %arg1[%c0_12, %c0_13] : memref<2x1xi32, #tpu.memory_space<vmem>>, vector<2x1xi32>
    %41 = vector.broadcast %3 : i32 to vector<2x1xi32>
    %42 = arith.cmpi slt, %41, %40 : vector<2x1xi32>
    %cst_14 = arith.constant 0.000000e+00 : f32
    %43 = vector.shape_cast %42 : vector<2x1xi1> to vector<2x1xi1>
    %44 = vector.broadcast %43 : vector<2x1xi1> to vector<2x128xi1>
    %45 = vector.broadcast %cst_14 : f32 to vector<2x128xf32>
    %46 = arith.select %44, %39, %45 : vector<2x128xi1>, vector<2x128xf32>
    %c0_15 = arith.constant 0 : index
    %47 = arith.index_cast %3 : i32 to index
    %c0_16 = arith.constant 0 : index
    %c0_17 = arith.constant 0 : index
    %48 = vector.load %arg5[%c0_15, %47, %c0_16, %c0_17] : memref<1x8x2x128xf32, #tpu.memory_space<vmem>>, vector<1x1x2x128xf32>
    %49 = vector.shape_cast %48 : vector<1x1x2x128xf32> to vector<2x128xf32>
    %50 = vector.shape_cast %46 : vector<2x128xf32> to vector<1x1x2x128xf32>
    tpu.vector_store %arg5[%c0_15, %47, %c0_16, %c0_17], %50 {strides = array<i32>} : memref<1x8x2x128xf32, #tpu.memory_space<vmem>>, vector<1x1x2x128xf32>,
    %51 = vector.shape_cast %42 : vector<2x1xi1> to vector<2x1xi1>
    %52 = vector.broadcast %51 : vector<2x1xi1> to vector<2x128xi1>
    %53 = arith.select %52, %39, %0 : vector<2x128xi1>, vector<2x128xf32>
    %c1_i32_18 = arith.constant 1 : i32
    %c1_i32_19 = arith.constant 1 : i32
    %54 = arith.cmpi eq, %arg0, %c1_i32_19 : i32
    %c7_i32_20 = arith.constant 7 : i32
    %55 = arith.subi %c7_i32_20, %c1_i32_18 : i32
    %56 = arith.select %54, %55, %c1_i32_18 : i32
    %c0_21 = arith.constant 0 : index
    %57 = arith.index_cast %56 : i32 to index
    %c0_22 = arith.constant 0 : index
    %c0_23 = arith.constant 0 : index
    %58 = vector.load %arg2[%c0_21, %57, %c0_22, %c0_23] : memref<1x8x2x384xf32, #tpu.memory_space<vmem>>, vector<1x1x2x384xf32>
    %59 = vector.shape_cast %58 : vector<1x1x2x384xf32> to vector<2x384xf32>
    %c0_24 = arith.constant 0 : index
    %c0_25 = arith.constant 0 : index
    %c0_26 = arith.constant 0 : index
    %60 = vector.load %arg3[%c0_24, %c0_25, %c0_26] : memref<1x128x384xf32, #tpu.memory_space<vmem>>, vector<1x128x384xf32>
    %61 = vector.shape_cast %60 : vector<1x128x384xf32> to vector<128x384xf32>
    %cst_27 = arith.constant dense<0.000000e+00> : vector<2x384xf32>
    %62 = tpu.matmul %53, %61, %cst_27 {dimension_numbers = #tpu.dot_dimension_numbers<[1], [0], [0], [1], [0, 0, 1, 1], [], []>} : vector<2x128xf32>, vector<128x384xf32>, vector<2x384xf32> -> vector<2x384xf32>
    %c0_28 = arith.constant 0 : index
    %c0_29 = arith.constant 0 : index
    %c0_30 = arith.constant 0 : index
    %63 = vector.load %arg4[%c0_28, %c0_29, %c0_30] : memref<1x1x384xf32, #tpu.memory_space<vmem>>, vector<1x1x384xf32>
    %64 = vector.shape_cast %63 : vector<1x1x384xf32> to vector<1x384xf32>
    %65 = vector.broadcast %64 : vector<1x384xf32> to vector<2x384xf32>
    %66 = arith.addf %62, %65 : vector<2x384xf32>
    %67 = vector.extract_strided_slice %59 {offsets = [0, 0], sizes = [2, 128], strides = [1, 1]} : vector<2x384xf32> to vector<2x128xf32>
    %68 = vector.extract_strided_slice %66 {offsets = [0, 0], sizes = [2, 128], strides = [1, 1]} : vector<2x384xf32> to vector<2x128xf32>
    %69 = arith.addf %67, %68 : vector<2x128xf32>
    %70 = arith.negf %69 : vector<2x128xf32>
    %71 = math.exp %70 : vector<2x128xf32>
    %cst_31 = arith.constant 1.000000e+00 : f32
    %72 = vector.broadcast %cst_31 : f32 to vector<2x128xf32>
    %73 = arith.addf %72, %71 : vector<2x128xf32>
    %74 = arith.divf %72, %73 : vector<2x128xf32>
    %75 = vector.extract_strided_slice %59 {offsets = [0, 128], sizes = [2, 128], strides = [1, 1]} : vector<2x384xf32> to vector<2x128xf32>
    %76 = vector.extract_strided_slice %66 {offsets = [0, 128], sizes = [2, 128], strides = [1, 1]} : vector<2x384xf32> to vector<2x128xf32>
    %77 = arith.addf %75, %76 : vector<2x128xf32>
    %78 = arith.negf %77 : vector<2x128xf32>
    %79 = math.exp %78 : vector<2x128xf32>
    %cst_32 = arith.constant 1.000000e+00 : f32
    %80 = vector.broadcast %cst_32 : f32 to vector<2x128xf32>
    %81 = arith.addf %80, %79 : vector<2x128xf32>
    %82 = arith.divf %80, %81 : vector<2x128xf32>
    %83 = vector.extract_strided_slice %59 {offsets = [0, 256], sizes = [2, 128], strides = [1, 1]} : vector<2x384xf32> to vector<2x128xf32>
    %84 = vector.extract_strided_slice %66 {offsets = [0, 256], sizes = [2, 128], strides = [1, 1]} : vector<2x384xf32> to vector<2x128xf32>
    %85 = arith.mulf %74, %84 : vector<2x128xf32>
    %86 = arith.addf %83, %85 : vector<2x128xf32>
    %87 = math.tanh %86 : vector<2x128xf32>
    %cst_33 = arith.constant 1.000000e+00 : f32
    %88 = vector.broadcast %cst_33 : f32 to vector<2x128xf32>
    %89 = arith.subf %88, %82 : vector<2x128xf32>
    %90 = arith.mulf %89, %87 : vector<2x128xf32>
    %91 = arith.mulf %82, %53 : vector<2x128xf32>
    %92 = arith.addf %90, %91 : vector<2x128xf32>
    %c0_34 = arith.constant 0 : index
    %c0_35 = arith.constant 0 : index
    %93 = vector.load %arg1[%c0_34, %c0_35] : memref<2x1xi32, #tpu.memory_space<vmem>>, vector<2x1xi32>
    %94 = vector.broadcast %56 : i32 to vector<2x1xi32>
    %95 = arith.cmpi slt, %94, %93 : vector<2x1xi32>
    %cst_36 = arith.constant 0.000000e+00 : f32
    %96 = vector.shape_cast %95 : vector<2x1xi1> to vector<2x1xi1>
    %97 = vector.broadcast %96 : vector<2x1xi1> to vector<2x128xi1>
    %98 = vector.broadcast %cst_36 : f32 to vector<2x128xf32>
    %99 = arith.select %97, %92, %98 : vector<2x128xi1>, vector<2x128xf32>
    %c0_37 = arith.constant 0 : index
    %100 = arith.index_cast %56 : i32 to index
    %c0_38 = arith.constant 0 : index
    %c0_39 = arith.constant 0 : index
    %101 = vector.load %arg5[%c0_37, %100, %c0_38, %c0_39] : memref<1x8x2x128xf32, #tpu.memory_space<vmem>>, vector<1x1x2x128xf32>
    %102 = vector.shape_cast %101 : vector<1x1x2x128xf32> to vector<2x128xf32>
    %103 = vector.shape_cast %99 : vector<2x128xf32> to vector<1x1x2x128xf32>
    tpu.vector_store %arg5[%c0_37, %100, %c0_38, %c0_39], %103 {strides = array<i32>} : memref<1x8x2x128xf32, #tpu.memory_space<vmem>>, vector<1x1x2x128xf32>,
    %104 = vector.shape_cast %95 : vector<2x1xi1> to vector<2x1xi1>
    %105 = vector.broadcast %104 : vector<2x1xi1> to vector<2x128xi1>
    %106 = arith.select %105, %92, %53 : vector<2x128xi1>, vector<2x128xf32>
    %c2_i32 = arith.constant 2 : i32
    %c1_i32_40 = arith.constant 1 : i32
    %107 = arith.cmpi eq, %arg0, %c1_i32_40 : i32
    %c7_i32_41 = arith.constant 7 : i32
    %108 = arith.subi %c7_i32_41, %c2_i32 : i32
    %109 = arith.select %107, %108, %c2_i32 : i32
    %c0_42 = arith.constant 0 : index
    %110 = arith.index_cast %109 : i32 to index
    %c0_43 = arith.constant 0 : index
    %c0_44 = arith.constant 0 : index
    %111 = vector.load %arg2[%c0_42, %110, %c0_43, %c0_44] : memref<1x8x2x384xf32, #tpu.memory_space<vmem>>, vector<1x1x2x384xf32>
    %112 = vector.shape_cast %111 : vector<1x1x2x384xf32> to vector<2x384xf32>
    %c0_45 = arith.constant 0 : index
    %c0_46 = arith.constant 0 : index
    %c0_47 = arith.constant 0 : index
    %113 = vector.load %arg3[%c0_45, %c0_46, %c0_47] : memref<1x128x384xf32, #tpu.memory_space<vmem>>, vector<1x128x384xf32>
    %114 = vector.shape_cast %113 : vector<1x128x384xf32> to vector<128x384xf32>
    %cst_48 = arith.constant dense<0.000000e+00> : vector<2x384xf32>
    %115 = tpu.matmul %106, %114, %cst_48 {dimension_numbers = #tpu.dot_dimension_numbers<[1], [0], [0], [1], [0, 0, 1, 1], [], []>} : vector<2x128xf32>, vector<128x384xf32>, vector<2x384xf32> -> vector<2x384xf32>
    %c0_49 = arith.constant 0 : index
    %c0_50 = arith.constant 0 : index
    %c0_51 = arith.constant 0 : index
    %116 = vector.load %arg4[%c0_49, %c0_50, %c0_51] : memref<1x1x384xf32, #tpu.memory_space<vmem>>, vector<1x1x384xf32>
    %117 = vector.shape_cast %116 : vector<1x1x384xf32> to vector<1x384xf32>
    %118 = vector.broadcast %117 : vector<1x384xf32> to vector<2x384xf32>
    %119 = arith.addf %115, %118 : vector<2x384xf32>
    %120 = vector.extract_strided_slice %112 {offsets = [0, 0], sizes = [2, 128], strides = [1, 1]} : vector<2x384xf32> to vector<2x128xf32>
    %121 = vector.extract_strided_slice %119 {offsets = [0, 0], sizes = [2, 128], strides = [1, 1]} : vector<2x384xf32> to vector<2x128xf32>
    %122 = arith.addf %120, %121 : vector<2x128xf32>
    %123 = arith.negf %122 : vector<2x128xf32>
    %124 = math.exp %123 : vector<2x128xf32>
    %cst_52 = arith.constant 1.000000e+00 : f32
    %125 = vector.broadcast %cst_52 : f32 to vector<2x128xf32>
    %126 = arith.addf %125, %124 : vector<2x128xf32>
    %127 = arith.divf %125, %126 : vector<2x128xf32>
    %128 = vector.extract_strided_slice %112 {offsets = [0, 128], sizes = [2, 128], strides = [1, 1]} : vector<2x384xf32> to vector<2x128xf32>
    %129 = vector.extract_strided_slice %119 {offsets = [0, 128], sizes = [2, 128], strides = [1, 1]} : vector<2x384xf32> to vector<2x128xf32>
    %130 = arith.addf %128, %129 : vector<2x128xf32>
    %131 = arith.negf %130 : vector<2x128xf32>
    %132 = math.exp %131 : vector<2x128xf32>
    %cst_53 = arith.constant 1.000000e+00 : f32
    %133 = vector.broadcast %cst_53 : f32 to vector<2x128xf32>
    %134 = arith.addf %133, %132 : vector<2x128xf32>
    %135 = arith.divf %133, %134 : vector<2x128xf32>
    %136 = vector.extract_strided_slice %112 {offsets = [0, 256], sizes = [2, 128], strides = [1, 1]} : vector<2x384xf32> to vector<2x128xf32>
    %137 = vector.extract_strided_slice %119 {offsets = [0, 256], sizes = [2, 128], strides = [1, 1]} : vector<2x384xf32> to vector<2x128xf32>
    %138 = arith.mulf %127, %137 : vector<2x128xf32>
    %139 = arith.addf %136, %138 : vector<2x128xf32>
    %140 = math.tanh %139 : vector<2x128xf32>
    %cst_54 = arith.constant 1.000000e+00 : f32
    %141 = vector.broadcast %cst_54 : f32 to vector<2x128xf32>
    %142 = arith.subf %141, %135 : vector<2x128xf32>
    %143 = arith.mulf %142, %140 : vector<2x128xf32>
    %144 = arith.mulf %135, %106 : vector<2x128xf32>
    %145 = arith.addf %143, %144 : vector<2x128xf32>
    %c0_55 = arith.constant 0 : index
    %c0_56 = arith.constant 0 : index
    %146 = vector.load %arg1[%c0_55, %c0_56] : memref<2x1xi32, #tpu.memory_space<vmem>>, vector<2x1xi32>
    %147 = vector.broadcast %109 : i32 to vector<2x1xi32>
    %148 = arith.cmpi slt, %147, %146 : vector<2x1xi32>
    %cst_57 = arith.constant 0.000000e+00 : f32
    %149 = vector.shape_cast %148 : vector<2x1xi1> to vector<2x1xi1>
    %150 = vector.broadcast %149 : vector<2x1xi1> to vector<2x128xi1>
    %151 = vector.broadcast %cst_57 : f32 to vector<2x128xf32>
    %152 = arith.select %150, %145, %151 : vector<2x128xi1>, vector<2x128xf32>
    %c0_58 = arith.constant 0 : index
    %153 = arith.index_cast %109 : i32 to index
    %c0_59 = arith.constant 0 : index
    %c0_60 = arith.constant 0 : index
    %154 = vector.load %arg5[%c0_58, %153, %c0_59, %c0_60] : memref<1x8x2x128xf32, #tpu.memory_space<vmem>>, vector<1x1x2x128xf32>
    %155 = vector.shape_cast %154 : vector<1x1x2x128xf32> to vector<2x128xf32>
    %156 = vector.shape_cast %152 : vector<2x128xf32> to vector<1x1x2x128xf32>
    tpu.vector_store %arg5[%c0_58, %153, %c0_59, %c0_60], %156 {strides = array<i32>} : memref<1x8x2x128xf32, #tpu.memory_space<vmem>>, vector<1x1x2x128xf32>,
    %157 = vector.shape_cast %148 : vector<2x1xi1> to vector<2x1xi1>
    %158 = vector.broadcast %157 : vector<2x1xi1> to vector<2x128xi1>
    %159 = arith.select %158, %145, %106 : vector<2x128xi1>, vector<2x128xf32>
    %c3_i32 = arith.constant 3 : i32
    %c1_i32_61 = arith.constant 1 : i32
    %160 = arith.cmpi eq, %arg0, %c1_i32_61 : i32
    %c7_i32_62 = arith.constant 7 : i32
    %161 = arith.subi %c7_i32_62, %c3_i32 : i32
    %162 = arith.select %160, %161, %c3_i32 : i32
    %c0_63 = arith.constant 0 : index
    %163 = arith.index_cast %162 : i32 to index
    %c0_64 = arith.constant 0 : index
    %c0_65 = arith.constant 0 : index
    %164 = vector.load %arg2[%c0_63, %163, %c0_64, %c0_65] : memref<1x8x2x384xf32, #tpu.memory_space<vmem>>, vector<1x1x2x384xf32>
    %165 = vector.shape_cast %164 : vector<1x1x2x384xf32> to vector<2x384xf32>
    %c0_66 = arith.constant 0 : index
    %c0_67 = arith.constant 0 : index
    %c0_68 = arith.constant 0 : index
    %166 = vector.load %arg3[%c0_66, %c0_67, %c0_68] : memref<1x128x384xf32, #tpu.memory_space<vmem>>, vector<1x128x384xf32>
    %167 = vector.shape_cast %166 : vector<1x128x384xf32> to vector<128x384xf32>
    %cst_69 = arith.constant dense<0.000000e+00> : vector<2x384xf32>
    %168 = tpu.matmul %159, %167, %cst_69 {dimension_numbers = #tpu.dot_dimension_numbers<[1], [0], [0], [1], [0, 0, 1, 1], [], []>} : vector<2x128xf32>, vector<128x384xf32>, vector<2x384xf32> -> vector<2x384xf32>
    %c0_70 = arith.constant 0 : index
    %c0_71 = arith.constant 0 : index
    %c0_72 = arith.constant 0 : index
    %169 = vector.load %arg4[%c0_70, %c0_71, %c0_72] : memref<1x1x384xf32, #tpu.memory_space<vmem>>, vector<1x1x384xf32>
    %170 = vector.shape_cast %169 : vector<1x1x384xf32> to vector<1x384xf32>
    %171 = vector.broadcast %170 : vector<1x384xf32> to vector<2x384xf32>
    %172 = arith.addf %168, %171 : vector<2x384xf32>
    %173 = vector.extract_strided_slice %165 {offsets = [0, 0], sizes = [2, 128], strides = [1, 1]} : vector<2x384xf32> to vector<2x128xf32>
    %174 = vector.extract_strided_slice %172 {offsets = [0, 0], sizes = [2, 128], strides = [1, 1]} : vector<2x384xf32> to vector<2x128xf32>
    %175 = arith.addf %173, %174 : vector<2x128xf32>
    %176 = arith.negf %175 : vector<2x128xf32>
    %177 = math.exp %176 : vector<2x128xf32>
    %cst_73 = arith.constant 1.000000e+00 : f32
    %178 = vector.broadcast %cst_73 : f32 to vector<2x128xf32>
    %179 = arith.addf %178, %177 : vector<2x128xf32>
    %180 = arith.divf %178, %179 : vector<2x128xf32>
    %181 = vector.extract_strided_slice %165 {offsets = [0, 128], sizes = [2, 128], strides = [1, 1]} : vector<2x384xf32> to vector<2x128xf32>
    %182 = vector.extract_strided_slice %172 {offsets = [0, 128], sizes = [2, 128], strides = [1, 1]} : vector<2x384xf32> to vector<2x128xf32>
    %183 = arith.addf %181, %182 : vector<2x128xf32>
    %184 = arith.negf %183 : vector<2x128xf32>
    %185 = math.exp %184 : vector<2x128xf32>
    %cst_74 = arith.constant 1.000000e+00 : f32
    %186 = vector.broadcast %cst_74 : f32 to vector<2x128xf32>
    %187 = arith.addf %186, %185 : vector<2x128xf32>
    %188 = arith.divf %186, %187 : vector<2x128xf32>
    %189 = vector.extract_strided_slice %165 {offsets = [0, 256], sizes = [2, 128], strides = [1, 1]} : vector<2x384xf32> to vector<2x128xf32>
    %190 = vector.extract_strided_slice %172 {offsets = [0, 256], sizes = [2, 128], strides = [1, 1]} : vector<2x384xf32> to vector<2x128xf32>
    %191 = arith.mulf %180, %190 : vector<2x128xf32>
    %192 = arith.addf %189, %191 : vector<2x128xf32>
    %193 = math.tanh %192 : vector<2x128xf32>
    %cst_75 = arith.constant 1.000000e+00 : f32
    %194 = vector.broadcast %cst_75 : f32 to vector<2x128xf32>
    %195 = arith.subf %194, %188 : vector<2x128xf32>
    %196 = arith.mulf %195, %193 : vector<2x128xf32>
    %197 = arith.mulf %188, %159 : vector<2x128xf32>
    %198 = arith.addf %196, %197 : vector<2x128xf32>
    %c0_76 = arith.constant 0 : index
    %c0_77 = arith.constant 0 : index
    %199 = vector.load %arg1[%c0_76, %c0_77] : memref<2x1xi32, #tpu.memory_space<vmem>>, vector<2x1xi32>
    %200 = vector.broadcast %162 : i32 to vector<2x1xi32>
    %201 = arith.cmpi slt, %200, %199 : vector<2x1xi32>
    %cst_78 = arith.constant 0.000000e+00 : f32
    %202 = vector.shape_cast %201 : vector<2x1xi1> to vector<2x1xi1>
    %203 = vector.broadcast %202 : vector<2x1xi1> to vector<2x128xi1>
    %204 = vector.broadcast %cst_78 : f32 to vector<2x128xf32>
    %205 = arith.select %203, %198, %204 : vector<2x128xi1>, vector<2x128xf32>
    %c0_79 = arith.constant 0 : index
    %206 = arith.index_cast %162 : i32 to index
    %c0_80 = arith.constant 0 : index
    %c0_81 = arith.constant 0 : index
    %207 = vector.load %arg5[%c0_79, %206, %c0_80, %c0_81] : memref<1x8x2x128xf32, #tpu.memory_space<vmem>>, vector<1x1x2x128xf32>
    %208 = vector.shape_cast %207 : vector<1x1x2x128xf32> to vector<2x128xf32>
    %209 = vector.shape_cast %205 : vector<2x128xf32> to vector<1x1x2x128xf32>
    tpu.vector_store %arg5[%c0_79, %206, %c0_80, %c0_81], %209 {strides = array<i32>} : memref<1x8x2x128xf32, #tpu.memory_space<vmem>>, vector<1x1x2x128xf32>,
    %210 = vector.shape_cast %201 : vector<2x1xi1> to vector<2x1xi1>
    %211 = vector.broadcast %210 : vector<2x1xi1> to vector<2x128xi1>
    %212 = arith.select %211, %198, %159 : vector<2x128xi1>, vector<2x128xf32>
    %c4_i32 = arith.constant 4 : i32
    %c1_i32_82 = arith.constant 1 : i32
    %213 = arith.cmpi eq, %arg0, %c1_i32_82 : i32
    %c7_i32_83 = arith.constant 7 : i32
    %214 = arith.subi %c7_i32_83, %c4_i32 : i32
    %215 = arith.select %213, %214, %c4_i32 : i32
    %c0_84 = arith.constant 0 : index
    %216 = arith.index_cast %215 : i32 to index
    %c0_85 = arith.constant 0 : index
    %c0_86 = arith.constant 0 : index
    %217 = vector.load %arg2[%c0_84, %216, %c0_85, %c0_86] : memref<1x8x2x384xf32, #tpu.memory_space<vmem>>, vector<1x1x2x384xf32>
    %218 = vector.shape_cast %217 : vector<1x1x2x384xf32> to vector<2x384xf32>
    %c0_87 = arith.constant 0 : index
    %c0_88 = arith.constant 0 : index
    %c0_89 = arith.constant 0 : index
    %219 = vector.load %arg3[%c0_87, %c0_88, %c0_89] : memref<1x128x384xf32, #tpu.memory_space<vmem>>, vector<1x128x384xf32>
    %220 = vector.shape_cast %219 : vector<1x128x384xf32> to vector<128x384xf32>
    %cst_90 = arith.constant dense<0.000000e+00> : vector<2x384xf32>
    %221 = tpu.matmul %212, %220, %cst_90 {dimension_numbers = #tpu.dot_dimension_numbers<[1], [0], [0], [1], [0, 0, 1, 1], [], []>} : vector<2x128xf32>, vector<128x384xf32>, vector<2x384xf32> -> vector<2x384xf32>
    %c0_91 = arith.constant 0 : index
    %c0_92 = arith.constant 0 : index
    %c0_93 = arith.constant 0 : index
    %222 = vector.load %arg4[%c0_91, %c0_92, %c0_93] : memref<1x1x384xf32, #tpu.memory_space<vmem>>, vector<1x1x384xf32>
    %223 = vector.shape_cast %222 : vector<1x1x384xf32> to vector<1x384xf32>
    %224 = vector.broadcast %223 : vector<1x384xf32> to vector<2x384xf32>
    %225 = arith.addf %221, %224 : vector<2x384xf32>
    %226 = vector.extract_strided_slice %218 {offsets = [0, 0], sizes = [2, 128], strides = [1, 1]} : vector<2x384xf32> to vector<2x128xf32>
    %227 = vector.extract_strided_slice %225 {offsets = [0, 0], sizes = [2, 128], strides = [1, 1]} : vector<2x384xf32> to vector<2x128xf32>
    %228 = arith.addf %226, %227 : vector<2x128xf32>
    %229 = arith.negf %228 : vector<2x128xf32>
    %230 = math.exp %229 : vector<2x128xf32>
    %cst_94 = arith.constant 1.000000e+00 : f32
    %231 = vector.broadcast %cst_94 : f32 to vector<2x128xf32>
    %232 = arith.addf %231, %230 : vector<2x128xf32>
    %233 = arith.divf %231, %232 : vector<2x128xf32>
    %234 = vector.extract_strided_slice %218 {offsets = [0, 128], sizes = [2, 128], strides = [1, 1]} : vector<2x384xf32> to vector<2x128xf32>
    %235 = vector.extract_strided_slice %225 {offsets = [0, 128], sizes = [2, 128], strides = [1, 1]} : vector<2x384xf32> to vector<2x128xf32>
    %236 = arith.addf %234, %235 : vector<2x128xf32>
    %237 = arith.negf %236 : vector<2x128xf32>
    %238 = math.exp %237 : vector<2x128xf32>
    %cst_95 = arith.constant 1.000000e+00 : f32
    %239 = vector.broadcast %cst_95 : f32 to vector<2x128xf32>
    %240 = arith.addf %239, %238 : vector<2x128xf32>
    %241 = arith.divf %239, %240 : vector<2x128xf32>
    %242 = vector.extract_strided_slice %218 {offsets = [0, 256], sizes = [2, 128], strides = [1, 1]} : vector<2x384xf32> to vector<2x128xf32>
    %243 = vector.extract_strided_slice %225 {offsets = [0, 256], sizes = [2, 128], strides = [1, 1]} : vector<2x384xf32> to vector<2x128xf32>
    %244 = arith.mulf %233, %243 : vector<2x128xf32>
    %245 = arith.addf %242, %244 : vector<2x128xf32>
    %246 = math.tanh %245 : vector<2x128xf32>
    %cst_96 = arith.constant 1.000000e+00 : f32
    %247 = vector.broadcast %cst_96 : f32 to vector<2x128xf32>
    %248 = arith.subf %247, %241 : vector<2x128xf32>
    %249 = arith.mulf %248, %246 : vector<2x128xf32>
    %250 = arith.mulf %241, %212 : vector<2x128xf32>
    %251 = arith.addf %249, %250 : vector<2x128xf32>
    %c0_97 = arith.constant 0 : index
    %c0_98 = arith.constant 0 : index
    %252 = vector.load %arg1[%c0_97, %c0_98] : memref<2x1xi32, #tpu.memory_space<vmem>>, vector<2x1xi32>
    %253 = vector.broadcast %215 : i32 to vector<2x1xi32>
    %254 = arith.cmpi slt, %253, %252 : vector<2x1xi32>
    %cst_99 = arith.constant 0.000000e+00 : f32
    %255 = vector.shape_cast %254 : vector<2x1xi1> to vector<2x1xi1>
    %256 = vector.broadcast %255 : vector<2x1xi1> to vector<2x128xi1>
    %257 = vector.broadcast %cst_99 : f32 to vector<2x128xf32>
    %258 = arith.select %256, %251, %257 : vector<2x128xi1>, vector<2x128xf32>
    %c0_100 = arith.constant 0 : index
    %259 = arith.index_cast %215 : i32 to index
    %c0_101 = arith.constant 0 : index
    %c0_102 = arith.constant 0 : index
    %260 = vector.load %arg5[%c0_100, %259, %c0_101, %c0_102] : memref<1x8x2x128xf32, #tpu.memory_space<vmem>>, vector<1x1x2x128xf32>
    %261 = vector.shape_cast %260 : vector<1x1x2x128xf32> to vector<2x128xf32>
    %262 = vector.shape_cast %258 : vector<2x128xf32> to vector<1x1x2x128xf32>
    tpu.vector_store %arg5[%c0_100, %259, %c0_101, %c0_102], %262 {strides = array<i32>} : memref<1x8x2x128xf32, #tpu.memory_space<vmem>>, vector<1x1x2x128xf32>,
    %263 = vector.shape_cast %254 : vector<2x1xi1> to vector<2x1xi1>
    %264 = vector.broadcast %263 : vector<2x1xi1> to vector<2x128xi1>
    %265 = arith.select %264, %251, %212 : vector<2x128xi1>, vector<2x128xf32>
    %c5_i32 = arith.constant 5 : i32
    %c1_i32_103 = arith.constant 1 : i32
    %266 = arith.cmpi eq, %arg0, %c1_i32_103 : i32
    %c7_i32_104 = arith.constant 7 : i32
    %267 = arith.subi %c7_i32_104, %c5_i32 : i32
    %268 = arith.select %266, %267, %c5_i32 : i32
    %c0_105 = arith.constant 0 : index
    %269 = arith.index_cast %268 : i32 to index
    %c0_106 = arith.constant 0 : index
    %c0_107 = arith.constant 0 : index
    %270 = vector.load %arg2[%c0_105, %269, %c0_106, %c0_107] : memref<1x8x2x384xf32, #tpu.memory_space<vmem>>, vector<1x1x2x384xf32>
    %271 = vector.shape_cast %270 : vector<1x1x2x384xf32> to vector<2x384xf32>
    %c0_108 = arith.constant 0 : index
    %c0_109 = arith.constant 0 : index
    %c0_110 = arith.constant 0 : index
    %272 = vector.load %arg3[%c0_108, %c0_109, %c0_110] : memref<1x128x384xf32, #tpu.memory_space<vmem>>, vector<1x128x384xf32>
    %273 = vector.shape_cast %272 : vector<1x128x384xf32> to vector<128x384xf32>
    %cst_111 = arith.constant dense<0.000000e+00> : vector<2x384xf32>
    %274 = tpu.matmul %265, %273, %cst_111 {dimension_numbers = #tpu.dot_dimension_numbers<[1], [0], [0], [1], [0, 0, 1, 1], [], []>} : vector<2x128xf32>, vector<128x384xf32>, vector<2x384xf32> -> vector<2x384xf32>
    %c0_112 = arith.constant 0 : index
    %c0_113 = arith.constant 0 : index
    %c0_114 = arith.constant 0 : index
    %275 = vector.load %arg4[%c0_112, %c0_113, %c0_114] : memref<1x1x384xf32, #tpu.memory_space<vmem>>, vector<1x1x384xf32>
    %276 = vector.shape_cast %275 : vector<1x1x384xf32> to vector<1x384xf32>
    %277 = vector.broadcast %276 : vector<1x384xf32> to vector<2x384xf32>
    %278 = arith.addf %274, %277 : vector<2x384xf32>
    %279 = vector.extract_strided_slice %271 {offsets = [0, 0], sizes = [2, 128], strides = [1, 1]} : vector<2x384xf32> to vector<2x128xf32>
    %280 = vector.extract_strided_slice %278 {offsets = [0, 0], sizes = [2, 128], strides = [1, 1]} : vector<2x384xf32> to vector<2x128xf32>
    %281 = arith.addf %279, %280 : vector<2x128xf32>
    %282 = arith.negf %281 : vector<2x128xf32>
    %283 = math.exp %282 : vector<2x128xf32>
    %cst_115 = arith.constant 1.000000e+00 : f32
    %284 = vector.broadcast %cst_115 : f32 to vector<2x128xf32>
    %285 = arith.addf %284, %283 : vector<2x128xf32>
    %286 = arith.divf %284, %285 : vector<2x128xf32>
    %287 = vector.extract_strided_slice %271 {offsets = [0, 128], sizes = [2, 128], strides = [1, 1]} : vector<2x384xf32> to vector<2x128xf32>
    %288 = vector.extract_strided_slice %278 {offsets = [0, 128], sizes = [2, 128], strides = [1, 1]} : vector<2x384xf32> to vector<2x128xf32>
    %289 = arith.addf %287, %288 : vector<2x128xf32>
    %290 = arith.negf %289 : vector<2x128xf32>
    %291 = math.exp %290 : vector<2x128xf32>
    %cst_116 = arith.constant 1.000000e+00 : f32
    %292 = vector.broadcast %cst_116 : f32 to vector<2x128xf32>
    %293 = arith.addf %292, %291 : vector<2x128xf32>
    %294 = arith.divf %292, %293 : vector<2x128xf32>
    %295 = vector.extract_strided_slice %271 {offsets = [0, 256], sizes = [2, 128], strides = [1, 1]} : vector<2x384xf32> to vector<2x128xf32>
    %296 = vector.extract_strided_slice %278 {offsets = [0, 256], sizes = [2, 128], strides = [1, 1]} : vector<2x384xf32> to vector<2x128xf32>
    %297 = arith.mulf %286, %296 : vector<2x128xf32>
    %298 = arith.addf %295, %297 : vector<2x128xf32>
    %299 = math.tanh %298 : vector<2x128xf32>
    %cst_117 = arith.constant 1.000000e+00 : f32
    %300 = vector.broadcast %cst_117 : f32 to vector<2x128xf32>
    %301 = arith.subf %300, %294 : vector<2x128xf32>
    %302 = arith.mulf %301, %299 : vector<2x128xf32>
    %303 = arith.mulf %294, %265 : vector<2x128xf32>
    %304 = arith.addf %302, %303 : vector<2x128xf32>
    %c0_118 = arith.constant 0 : index
    %c0_119 = arith.constant 0 : index
    %305 = vector.load %arg1[%c0_118, %c0_119] : memref<2x1xi32, #tpu.memory_space<vmem>>, vector<2x1xi32>
    %306 = vector.broadcast %268 : i32 to vector<2x1xi32>
    %307 = arith.cmpi slt, %306, %305 : vector<2x1xi32>
    %cst_120 = arith.constant 0.000000e+00 : f32
    %308 = vector.shape_cast %307 : vector<2x1xi1> to vector<2x1xi1>
    %309 = vector.broadcast %308 : vector<2x1xi1> to vector<2x128xi1>
    %310 = vector.broadcast %cst_120 : f32 to vector<2x128xf32>
    %311 = arith.select %309, %304, %310 : vector<2x128xi1>, vector<2x128xf32>
    %c0_121 = arith.constant 0 : index
    %312 = arith.index_cast %268 : i32 to index
    %c0_122 = arith.constant 0 : index
    %c0_123 = arith.constant 0 : index
    %313 = vector.load %arg5[%c0_121, %312, %c0_122, %c0_123] : memref<1x8x2x128xf32, #tpu.memory_space<vmem>>, vector<1x1x2x128xf32>
    %314 = vector.shape_cast %313 : vector<1x1x2x128xf32> to vector<2x128xf32>
    %315 = vector.shape_cast %311 : vector<2x128xf32> to vector<1x1x2x128xf32>
    tpu.vector_store %arg5[%c0_121, %312, %c0_122, %c0_123], %315 {strides = array<i32>} : memref<1x8x2x128xf32, #tpu.memory_space<vmem>>, vector<1x1x2x128xf32>,
    %316 = vector.shape_cast %307 : vector<2x1xi1> to vector<2x1xi1>
    %317 = vector.broadcast %316 : vector<2x1xi1> to vector<2x128xi1>
    %318 = arith.select %317, %304, %265 : vector<2x128xi1>, vector<2x128xf32>
    %c6_i32 = arith.constant 6 : i32
    %c1_i32_124 = arith.constant 1 : i32
    %319 = arith.cmpi eq, %arg0, %c1_i32_124 : i32
    %c7_i32_125 = arith.constant 7 : i32
    %320 = arith.subi %c7_i32_125, %c6_i32 : i32
    %321 = arith.select %319, %320, %c6_i32 : i32
    %c0_126 = arith.constant 0 : index
    %322 = arith.index_cast %321 : i32 to index
    %c0_127 = arith.constant 0 : index
    %c0_128 = arith.constant 0 : index
    %323 = vector.load %arg2[%c0_126, %322, %c0_127, %c0_128] : memref<1x8x2x384xf32, #tpu.memory_space<vmem>>, vector<1x1x2x384xf32>
    %324 = vector.shape_cast %323 : vector<1x1x2x384xf32> to vector<2x384xf32>
    %c0_129 = arith.constant 0 : index
    %c0_130 = arith.constant 0 : index
    %c0_131 = arith.constant 0 : index
    %325 = vector.load %arg3[%c0_129, %c0_130, %c0_131] : memref<1x128x384xf32, #tpu.memory_space<vmem>>, vector<1x128x384xf32>
    %326 = vector.shape_cast %325 : vector<1x128x384xf32> to vector<128x384xf32>
    %cst_132 = arith.constant dense<0.000000e+00> : vector<2x384xf32>
    %327 = tpu.matmul %318, %326, %cst_132 {dimension_numbers = #tpu.dot_dimension_numbers<[1], [0], [0], [1], [0, 0, 1, 1], [], []>} : vector<2x128xf32>, vector<128x384xf32>, vector<2x384xf32> -> vector<2x384xf32>
    %c0_133 = arith.constant 0 : index
    %c0_134 = arith.constant 0 : index
    %c0_135 = arith.constant 0 : index
    %328 = vector.load %arg4[%c0_133, %c0_134, %c0_135] : memref<1x1x384xf32, #tpu.memory_space<vmem>>, vector<1x1x384xf32>
    %329 = vector.shape_cast %328 : vector<1x1x384xf32> to vector<1x384xf32>
    %330 = vector.broadcast %329 : vector<1x384xf32> to vector<2x384xf32>
    %331 = arith.addf %327, %330 : vector<2x384xf32>
    %332 = vector.extract_strided_slice %324 {offsets = [0, 0], sizes = [2, 128], strides = [1, 1]} : vector<2x384xf32> to vector<2x128xf32>
    %333 = vector.extract_strided_slice %331 {offsets = [0, 0], sizes = [2, 128], strides = [1, 1]} : vector<2x384xf32> to vector<2x128xf32>
    %334 = arith.addf %332, %333 : vector<2x128xf32>
    %335 = arith.negf %334 : vector<2x128xf32>
    %336 = math.exp %335 : vector<2x128xf32>
    %cst_136 = arith.constant 1.000000e+00 : f32
    %337 = vector.broadcast %cst_136 : f32 to vector<2x128xf32>
    %338 = arith.addf %337, %336 : vector<2x128xf32>
    %339 = arith.divf %337, %338 : vector<2x128xf32>
    %340 = vector.extract_strided_slice %324 {offsets = [0, 128], sizes = [2, 128], strides = [1, 1]} : vector<2x384xf32> to vector<2x128xf32>
    %341 = vector.extract_strided_slice %331 {offsets = [0, 128], sizes = [2, 128], strides = [1, 1]} : vector<2x384xf32> to vector<2x128xf32>
    %342 = arith.addf %340, %341 : vector<2x128xf32>
    %343 = arith.negf %342 : vector<2x128xf32>
    %344 = math.exp %343 : vector<2x128xf32>
    %cst_137 = arith.constant 1.000000e+00 : f32
    %345 = vector.broadcast %cst_137 : f32 to vector<2x128xf32>
    %346 = arith.addf %345, %344 : vector<2x128xf32>
    %347 = arith.divf %345, %346 : vector<2x128xf32>
    %348 = vector.extract_strided_slice %324 {offsets = [0, 256], sizes = [2, 128], strides = [1, 1]} : vector<2x384xf32> to vector<2x128xf32>
    %349 = vector.extract_strided_slice %331 {offsets = [0, 256], sizes = [2, 128], strides = [1, 1]} : vector<2x384xf32> to vector<2x128xf32>
    %350 = arith.mulf %339, %349 : vector<2x128xf32>
    %351 = arith.addf %348, %350 : vector<2x128xf32>
    %352 = math.tanh %351 : vector<2x128xf32>
    %cst_138 = arith.constant 1.000000e+00 : f32
    %353 = vector.broadcast %cst_138 : f32 to vector<2x128xf32>
    %354 = arith.subf %353, %347 : vector<2x128xf32>
    %355 = arith.mulf %354, %352 : vector<2x128xf32>
    %356 = arith.mulf %347, %318 : vector<2x128xf32>
    %357 = arith.addf %355, %356 : vector<2x128xf32>
    %c0_139 = arith.constant 0 : index
    %c0_140 = arith.constant 0 : index
    %358 = vector.load %arg1[%c0_139, %c0_140] : memref<2x1xi32, #tpu.memory_space<vmem>>, vector<2x1xi32>
    %359 = vector.broadcast %321 : i32 to vector<2x1xi32>
    %360 = arith.cmpi slt, %359, %358 : vector<2x1xi32>
    %cst_141 = arith.constant 0.000000e+00 : f32
    %361 = vector.shape_cast %360 : vector<2x1xi1> to vector<2x1xi1>
    %362 = vector.broadcast %361 : vector<2x1xi1> to vector<2x128xi1>
    %363 = vector.broadcast %cst_141 : f32 to vector<2x128xf32>
    %364 = arith.select %362, %357, %363 : vector<2x128xi1>, vector<2x128xf32>
    %c0_142 = arith.constant 0 : index
    %365 = arith.index_cast %321 : i32 to index
    %c0_143 = arith.constant 0 : index
    %c0_144 = arith.constant 0 : index
    %366 = vector.load %arg5[%c0_142, %365, %c0_143, %c0_144] : memref<1x8x2x128xf32, #tpu.memory_space<vmem>>, vector<1x1x2x128xf32>
    %367 = vector.shape_cast %366 : vector<1x1x2x128xf32> to vector<2x128xf32>
    %368 = vector.shape_cast %364 : vector<2x128xf32> to vector<1x1x2x128xf32>
    tpu.vector_store %arg5[%c0_142, %365, %c0_143, %c0_144], %368 {strides = array<i32>} : memref<1x8x2x128xf32, #tpu.memory_space<vmem>>, vector<1x1x2x128xf32>,
    %369 = vector.shape_cast %360 : vector<2x1xi1> to vector<2x1xi1>
    %370 = vector.broadcast %369 : vector<2x1xi1> to vector<2x128xi1>
    %371 = arith.select %370, %357, %318 : vector<2x128xi1>, vector<2x128xf32>
    %c7_i32_145 = arith.constant 7 : i32
    %c1_i32_146 = arith.constant 1 : i32
    %372 = arith.cmpi eq, %arg0, %c1_i32_146 : i32
    %c7_i32_147 = arith.constant 7 : i32
    %373 = arith.subi %c7_i32_147, %c7_i32_145 : i32
    %374 = arith.select %372, %373, %c7_i32_145 : i32
    %c0_148 = arith.constant 0 : index
    %375 = arith.index_cast %374 : i32 to index
    %c0_149 = arith.constant 0 : index
    %c0_150 = arith.constant 0 : index
    %376 = vector.load %arg2[%c0_148, %375, %c0_149, %c0_150] : memref<1x8x2x384xf32, #tpu.memory_space<vmem>>, vector<1x1x2x384xf32>
    %377 = vector.shape_cast %376 : vector<1x1x2x384xf32> to vector<2x384xf32>
    %c0_151 = arith.constant 0 : index
    %c0_152 = arith.constant 0 : index
    %c0_153 = arith.constant 0 : index
    %378 = vector.load %arg3[%c0_151, %c0_152, %c0_153] : memref<1x128x384xf32, #tpu.memory_space<vmem>>, vector<1x128x384xf32>
    %379 = vector.shape_cast %378 : vector<1x128x384xf32> to vector<128x384xf32>
    %cst_154 = arith.constant dense<0.000000e+00> : vector<2x384xf32>
    %380 = tpu.matmul %371, %379, %cst_154 {dimension_numbers = #tpu.dot_dimension_numbers<[1], [0], [0], [1], [0, 0, 1, 1], [], []>} : vector<2x128xf32>, vector<128x384xf32>, vector<2x384xf32> -> vector<2x384xf32>
    %c0_155 = arith.constant 0 : index
    %c0_156 = arith.constant 0 : index
    %c0_157 = arith.constant 0 : index
    %381 = vector.load %arg4[%c0_155, %c0_156, %c0_157] : memref<1x1x384xf32, #tpu.memory_space<vmem>>, vector<1x1x384xf32>
    %382 = vector.shape_cast %381 : vector<1x1x384xf32> to vector<1x384xf32>
    %383 = vector.broadcast %382 : vector<1x384xf32> to vector<2x384xf32>
    %384 = arith.addf %380, %383 : vector<2x384xf32>
    %385 = vector.extract_strided_slice %377 {offsets = [0, 0], sizes = [2, 128], strides = [1, 1]} : vector<2x384xf32> to vector<2x128xf32>
    %386 = vector.extract_strided_slice %384 {offsets = [0, 0], sizes = [2, 128], strides = [1, 1]} : vector<2x384xf32> to vector<2x128xf32>
    %387 = arith.addf %385, %386 : vector<2x128xf32>
    %388 = arith.negf %387 : vector<2x128xf32>
    %389 = math.exp %388 : vector<2x128xf32>
    %cst_158 = arith.constant 1.000000e+00 : f32
    %390 = vector.broadcast %cst_158 : f32 to vector<2x128xf32>
    %391 = arith.addf %390, %389 : vector<2x128xf32>
    %392 = arith.divf %390, %391 : vector<2x128xf32>
    %393 = vector.extract_strided_slice %377 {offsets = [0, 128], sizes = [2, 128], strides = [1, 1]} : vector<2x384xf32> to vector<2x128xf32>
    %394 = vector.extract_strided_slice %384 {offsets = [0, 128], sizes = [2, 128], strides = [1, 1]} : vector<2x384xf32> to vector<2x128xf32>
    %395 = arith.addf %393, %394 : vector<2x128xf32>
    %396 = arith.negf %395 : vector<2x128xf32>
    %397 = math.exp %396 : vector<2x128xf32>
    %cst_159 = arith.constant 1.000000e+00 : f32
    %398 = vector.broadcast %cst_159 : f32 to vector<2x128xf32>
    %399 = arith.addf %398, %397 : vector<2x128xf32>
    %400 = arith.divf %398, %399 : vector<2x128xf32>
    %401 = vector.extract_strided_slice %377 {offsets = [0, 256], sizes = [2, 128], strides = [1, 1]} : vector<2x384xf32> to vector<2x128xf32>
    %402 = vector.extract_strided_slice %384 {offsets = [0, 256], sizes = [2, 128], strides = [1, 1]} : vector<2x384xf32> to vector<2x128xf32>
    %403 = arith.mulf %392, %402 : vector<2x128xf32>
    %404 = arith.addf %401, %403 : vector<2x128xf32>
    %405 = math.tanh %404 : vector<2x128xf32>
    %cst_160 = arith.constant 1.000000e+00 : f32
    %406 = vector.broadcast %cst_160 : f32 to vector<2x128xf32>
    %407 = arith.subf %406, %400 : vector<2x128xf32>
    %408 = arith.mulf %407, %405 : vector<2x128xf32>
    %409 = arith.mulf %400, %371 : vector<2x128xf32>
    %410 = arith.addf %408, %409 : vector<2x128xf32>
    %c0_161 = arith.constant 0 : index
    %c0_162 = arith.constant 0 : index
    %411 = vector.load %arg1[%c0_161, %c0_162] : memref<2x1xi32, #tpu.memory_space<vmem>>, vector<2x1xi32>
    %412 = vector.broadcast %374 : i32 to vector<2x1xi32>
    %413 = arith.cmpi slt, %412, %411 : vector<2x1xi32>
    %cst_163 = arith.constant 0.000000e+00 : f32
    %414 = vector.shape_cast %413 : vector<2x1xi1> to vector<2x1xi1>
    %415 = vector.broadcast %414 : vector<2x1xi1> to vector<2x128xi1>
    %416 = vector.broadcast %cst_163 : f32 to vector<2x128xf32>
    %417 = arith.select %415, %410, %416 : vector<2x128xi1>, vector<2x128xf32>
    %c0_164 = arith.constant 0 : index
    %418 = arith.index_cast %374 : i32 to index
    %c0_165 = arith.constant 0 : index
    %c0_166 = arith.constant 0 : index
    %419 = vector.load %arg5[%c0_164, %418, %c0_165, %c0_166] : memref<1x8x2x128xf32, #tpu.memory_space<vmem>>, vector<1x1x2x128xf32>
    %420 = vector.shape_cast %419 : vector<1x1x2x128xf32> to vector<2x128xf32>
    %421 = vector.shape_cast %417 : vector<2x128xf32> to vector<1x1x2x128xf32>
    tpu.vector_store %arg5[%c0_164, %418, %c0_165, %c0_166], %421 {strides = array<i32>} : memref<1x8x2x128xf32, #tpu.memory_space<vmem>>, vector<1x1x2x128xf32>,
    %422 = vector.shape_cast %413 : vector<2x1xi1> to vector<2x1xi1>
    %423 = vector.broadcast %422 : vector<2x1xi1> to vector<2x128xi1>
    %424 = arith.select %423, %410, %371 : vector<2x128xi1>, vector<2x128xf32>
    %c8_i32 = arith.constant 8 : i32
    return
  }
  func.func @transform_0(%arg0: i32) -> (i32, i32) {
    %c0_i32 = arith.constant 0 : i32
    %c0_i32_0 = arith.constant 0 : i32
    %c0_i32_1 = arith.constant 0 : i32
    return %c0_i32, %c0_i32_0 : i32, i32
  }
  func.func @transform_1(%arg0: i32) -> (i32, i32, i32, i32) {
    %c0_i32 = arith.constant 0 : i32
    %c0_i32_0 = arith.constant 0 : i32
    %c0_i32_1 = arith.constant 0 : i32
    %c0_i32_2 = arith.constant 0 : i32
    return %arg0, %c0_i32, %c0_i32_0, %c0_i32_1 : i32, i32, i32, i32
  }
  func.func @transform_2(%arg0: i32) -> (i32, i32, i32) {
    %c0_i32 = arith.constant 0 : i32
    %c0_i32_0 = arith.constant 0 : i32
    %c0_i32_1 = arith.constant 0 : i32
    return %arg0, %c0_i32, %c0_i32_0 : i32, i32, i32
  }
  func.func @transform_3(%arg0: i32) -> (i32, i32, i32) {
    %c0_i32 = arith.constant 0 : i32
    %c0_i32_0 = arith.constant 0 : i32
    %c0_i32_1 = arith.constant 0 : i32
    return %arg0, %c0_i32, %c0_i32_0 : i32, i32, i32
  }
  func.func @transform_4(%arg0: i32) -> (i32, i32, i32, i32) {
    %c0_i32 = arith.constant 0 : i32
    %c0_i32_0 = arith.constant 0 : i32
    %c0_i32_1 = arith.constant 0 : i32
    %c0_i32_2 = arith.constant 0 : i32
    return %arg0, %c0_i32, %c0_i32_0, %c0_i32_1 : i32, i32, i32, i32
  }
}

</mosaic_0001>

<llo_original>
// kernel: tpu_custom_call.1
$region0: #{tpu_custom_call.1}
  #allocation0 [shape = 'u32[]', space=smem, size = 0x4, offset = 0x4, fixed_abs, tag = 'smem constant byte address 0x4 - core index']
  #allocation1 [shape = 'u32[72,128]{1,0:T(1,128)}', space=vmem, size = 0x9000, scoped, tag = 'internal scratch']
  %s0 = inlined_call_operand.vmem [shape: s32[2,1], index: 0, kind: input, shape index: {}]
  %s1 = inlined_call_operand.hbm [shape: f32[2,8,2,384], index: 1, kind: input, shape index: {}]
  %s2 = inlined_call_operand.hbm [shape: f32[2,128,384], index: 2, kind: input, shape index: {}]
  %s3 = inlined_call_operand.hbm [shape: f32[2,1,384], index: 3, kind: input, shape index: {}]
  %s4 = inlined_call_operand.hbm [shape: f32[2,8,2,128], index: 4, kind: output, shape index: {}]
  %s5 = sld [smem:[#allocation0]]
  $region61: #{tpu_custom_call.1} parent=0
    _
  %s7 = ssub.s32 1, %s5
  %s8 = scalar_select 0, %s7, %s5
  $region1: #{tpu_custom_call.1} parent=0
    #allocation2 [shape = 'u8[49152]{0}', space=vmem, size = 0xc000, scoped, tag = 'input window, operand 1']
    #allocation3 [shape = 's32[2]{0}', space=sflag, size = 0x8, scoped, tag = 'scoped memory for tpu_custom_call.1']
    #allocation4 [shape = 's32[2]{0}', space=sflag, size = 0x8, scoped, tag = 'scoped memory for tpu_custom_call.1']
    #allocation5 [shape = 'u8[393216]{0}', space=vmem, size = 0x60000, scoped, tag = 'input window, operand 2']
    #allocation6 [shape = 's32[2]{0}', space=sflag, size = 0x8, scoped, tag = 'scoped memory for tpu_custom_call.1']
    #allocation7 [shape = 'u8[3072]{0}', space=vmem, size = 0xc00, scoped, tag = 'input window, operand 3']
    #allocation8 [shape = 'u8[16384]{0}', space=vmem, size = 0x4000, scoped, tag = 'output window, operand 0']
    %9 = vsyncpa [#allocation3], 0
    %s10 = scalar_lea.sflag [#allocation3], 1
    %11 = vsyncpa %s10, 0
    %12 = vsyncpa [#allocation6], 0
    %s13 = scalar_lea.sflag [#allocation6], 1
    %14 = vsyncpa %s13, 0
    %15 = vsyncpa [#allocation4], 0
    %s16 = scalar_lea.sflag [#allocation4], 1
    %17 = vsyncpa %s16, 0
    loop: start=0, step=1, limit=4
    $region2: #{tpu_custom_call.1} parent=1 // loop_pre_header
      _
    $region3: #{tpu_custom_call.1} parent=1 // loop_header
      %s19 = sphi 0, %s23
      %p20 = scmp.ge.s32.totalorder %s19, 4
      %s27 = sphi 0, %s27
      %s29 = sphi 0, %s27
      %s30 = sphi 0, %s29
      %s44 = sphi 0, %s30
      %s50 = sphi 0, %s52
      %s53 = sphi 0, %s50
      %s54 = sphi 0, %s53
      %s70 = sphi 0, %s54
      %s76 = sphi 0, %s78
      %s79 = sphi 0, %s76
      %s80 = sphi 0, %s79
      %s96 = sphi 0, %s80
      %s102 = sphi 0, %s104
      %s105 = sphi 0, %s102
      %s106 = sphi 0, %s105
      %s122 = sphi 0, %s106
      %s128 = sphi 0, %s130
      %s131 = sphi 0, %s128
      %s132 = sphi 0, %s131
      %s148 = sphi 0, %s132
    $region4: #{tpu_custom_call.1} parent=1 // loop_header_branch
      %22 = sbr.rel (%p20) target = $region8
    $region5: #{tpu_custom_call.1} parent=1 // loop_body
      %s24 = ssub.s32 %s19, 1
      %s25 = ssub.s32 %s19, 2
      %s26 = sadd.s32 %s19, 1
      %s28 = sadd.s32 %s27, 1
      %p31 = scmp.eq.s32.totalorder %s19, 1
      %p32 = scmp.ne.s32.totalorder %s27, %s29
      %p33 = scmp.eq.s32.totalorder %s19, 0
      %p34 = por %p32, %p33
      %p35 = scmp.ne.s32.totalorder %s27, %s29
      %p36 = scmp.eq.s32.totalorder %s24, 1
      %p37 = por %p35, %p36
      %p38 = scmp.ne.s32.totalorder %s29, %s30
      %p39 = scmp.eq.s32.totalorder %s24, 0
      %p40 = por %p38, %p39
      %p41 = scmp.ne.s32.totalorder %s29, %s30
      %p42 = scmp.eq.s32.totalorder %s25, 1
      %p43 = por %p41, %p42
      %p45 = scmp.ne.s32.totalorder %s30, %s44
      %p46 = scmp.eq.s32.totalorder %s25, 0
      %p47 = por %p45, %p46
      %s48 = ssub.s32 %s19, %s26
      %p49 = scmp.eq.s32.totalorder %s48, 0
      %s51 = sadd.s32 %s50, 1
      %s52 = scalar_select %p49, %s50, %s51
      %p55 = pneg %p49
      %p56 = scmp.eq.s32.totalorder %s19, 1
      %p57 = por %p55, %p56
      %p58 = scmp.ne.s32.totalorder %s50, %s53
      %p59 = scmp.eq.s32.totalorder %s19, 0
      %p60 = por %p58, %p59
      %p61 = scmp.ne.s32.totalorder %s50, %s53
      %p62 = scmp.eq.s32.totalorder %s24, 1
      %p63 = por %p61, %p62
      %p64 = scmp.ne.s32.totalorder %s53, %s54
      %p65 = scmp.eq.s32.totalorder %s24, 0
      %p66 = por %p64, %p65
      %p67 = scmp.ne.s32.totalorder %s53, %s54
      %p68 = scmp.eq.s32.totalorder %s25, 1
      %p69 = por %p67, %p68
      %p71 = scmp.ne.s32.totalorder %s54, %s70
      %p72 = scmp.eq.s32.totalorder %s25, 0
      %p73 = por %p71, %p72
      %s74 = ssub.s32 %s19, %s26
      %p75 = scmp.eq.s32.totalorder %s74, 0
      %s77 = sadd.s32 %s76, 1
      %s78 = scalar_select %p75, %s76, %s77
      %p81 = pneg %p75
      %p82 = scmp.eq.s32.totalorder %s19, 1
      %p83 = por %p81, %p82
      %p84 = scmp.ne.s32.totalorder %s76, %s79
      %p85 = scmp.eq.s32.totalorder %s19, 0
      %p86 = por %p84, %p85
      %p87 = scmp.ne.s32.totalorder %s76, %s79
      %p88 = scmp.eq.s32.totalorder %s24, 1
      %p89 = por %p87, %p88
      %p90 = scmp.ne.s32.totalorder %s79, %s80
      %p91 = scmp.eq.s32.totalorder %s24, 0
      %p92 = por %p90, %p91
      %p93 = scmp.ne.s32.totalorder %s79, %s80
      %p94 = scmp.eq.s32.totalorder %s25, 1
      %p95 = por %p93, %p94
      %p97 = scmp.ne.s32.totalorder %s80, %s96
      %p98 = scmp.eq.s32.totalorder %s25, 0
      %p99 = por %p97, %p98
      %s100 = ssub.s32 %s19, %s26
      %p101 = scmp.eq.s32.totalorder %s100, 0
      %s103 = sadd.s32 %s102, 1
      %s104 = scalar_select %p101, %s102, %s103
      %p107 = pneg %p101
      %p108 = scmp.eq.s32.totalorder %s19, 1
      %p109 = por %p107, %p108
      %p110 = scmp.ne.s32.totalorder %s102, %s105
      %p111 = scmp.eq.s32.totalorder %s19, 0
      %p112 = por %p110, %p111
      %p113 = scmp.ne.s32.totalorder %s102, %s105
      %p114 = scmp.eq.s32.totalorder %s24, 1
      %p115 = por %p113, %p114
      %p116 = scmp.ne.s32.totalorder %s105, %s106
      %p117 = scmp.eq.s32.totalorder %s24, 0
      %p118 = por %p116, %p117
      %p119 = scmp.ne.s32.totalorder %s105, %s106
      %p120 = scmp.eq.s32.totalorder %s25, 1
      %p121 = por %p119, %p120
      %p123 = scmp.ne.s32.totalorder %s106, %s122
      %p124 = scmp.eq.s32.totalorder %s25, 0
      %p125 = por %p123, %p124
      %s126 = ssub.s32 %s19, %s26
      %p127 = scmp.eq.s32.totalorder %s126, 0
      %s129 = sadd.s32 %s128, 1
      %s130 = scalar_select %p127, %s128, %s129
      %p133 = pneg %p127
      %p134 = scmp.eq.s32.totalorder %s19, 1
      %p135 = por %p133, %p134
      %p136 = scmp.ne.s32.totalorder %s128, %s131
      %p137 = scmp.eq.s32.totalorder %s19, 0
      %p138 = por %p136, %p137
      %p139 = scmp.ne.s32.totalorder %s128, %s131
      %p140 = scmp.eq.s32.totalorder %s24, 1
      %p141 = por %p139, %p140
      %p142 = scmp.ne.s32.totalorder %s131, %s132
      %p143 = scmp.eq.s32.totalorder %s24, 0
      %p144 = por %p142, %p143
      %p145 = scmp.ne.s32.totalorder %s131, %s132
      %p146 = scmp.eq.s32.totalorder %s25, 1
      %p147 = por %p145, %p146
      %p149 = scmp.ne.s32.totalorder %s132, %s148
      %p150 = scmp.eq.s32.totalorder %s25, 0
      %p151 = por %p149, %p150
      %p152 = scmp.le.s32.totalorder 1, %s19
      %p153 = scmp.lt.s32.totalorder %s19, 3
      %p154 = pnand %p152, %p153
      %p155 = pneg %p154
      // Predicated region
      $region9: #{tpu_custom_call.1} parent=5 // pred_check
        _
      $region10: #{tpu_custom_call.1} parent=5 // pred_check_branch
        %157 = sbr.rel (%p154) target = $region12
      $region11: #{tpu_custom_call.1} parent=5 // pred_region
        %s158 = ssub.s32 %s19, 1
        // Predicated region
        $region13: #{tpu_custom_call.1} parent=11 // pred_check
          %p159 = pneg %p40
        $region14: #{tpu_custom_call.1} parent=11 // pred_check_branch
          %161 = sbr.rel (%p159) target = $region16
        $region15: #{tpu_custom_call.1} parent=11 // pred_region
          _
        $region16: #{tpu_custom_call.1} parent=11 // pred_fallthru
          _
      $region12: #{tpu_custom_call.1} parent=5 // pred_fallthru
        _
      %p162 = scmp.lt.s32.totalorder %s19, 2
      // Predicated region
      $region17: #{tpu_custom_call.1} parent=5 // pred_check
        %p163 = pneg %p162
      $region18: #{tpu_custom_call.1} parent=5 // pred_check_branch
        %165 = sbr.rel (%p163) target = $region20
      $region19: #{tpu_custom_call.1} parent=5 // pred_region
        // Predicated region
        $region21: #{tpu_custom_call.1} parent=19 // pred_check
          %p166 = pneg %p60
        $region22: #{tpu_custom_call.1} parent=19 // pred_check_branch
          %168 = sbr.rel (%p166) target = $region24
        $region23: #{tpu_custom_call.1} parent=19 // pred_region
          %s169 = sand.u32 %s50, 1
          %s170 = scalar_lea.sflag [#allocation3], %s169
          %s171 = sand.u32 %s50, 1
          %s172 = smul.addr %s171, 48
          %s173 = scalar_lea.vmem [#allocation2], %s172
          %175 = vsyncadd %s170, 0
          %s176 = smul.addr %s19, 24
          %s177 = smul.addr %s176, 2
          %s178 = scalar_lea.hbm %s1, %s177
          %s179 = sshll.u32 %s178, 4
          %s180 = int_to_ptr.hbm [resolvable:$true] %s179
          %s181 = sshll.u32 %s173, 4
          %s182 = int_to_ptr.vmem [resolvable:$true] %s181
          %187 = dma.hbm_to_vmem [thread:$0]  %s180, 768, %s182, %s170, 96, 96, 6
        $region24: #{tpu_custom_call.1} parent=19 // pred_fallthru
          _
        // Predicated region
        $region25: #{tpu_custom_call.1} parent=19 // pred_check
          %p188 = pneg %p86
        $region26: #{tpu_custom_call.1} parent=19 // pred_check_branch
          %190 = sbr.rel (%p188) target = $region28
        $region27: #{tpu_custom_call.1} parent=19 // pred_region
          %s191 = sand.u32 %s19, 1
          %s192 = scalar_lea.sflag [#allocation6], %s191
          %s193 = sand.u32 %s76, 1
          %s194 = smul.addr %s193, 384
          %s195 = scalar_lea.vmem [#allocation5], %s194
          %197 = vsyncadd %s192, 0
          %s198 = smul.addr %s19, 48
          %s199 = smul.addr %s198, 8
          %s200 = scalar_lea.hbm %s2, %s199
          %s201 = sshll.u32 %s200, 4
          %s202 = int_to_ptr.hbm [resolvable:$true] %s201
          %s203 = sshll.u32 %s195, 4
          %s204 = int_to_ptr.vmem [resolvable:$true] %s203
          %209 = dma.hbm_to_vmem [thread:$0]  %s202, 6144, %s204, %s192, 384, 384, 24
        $region28: #{tpu_custom_call.1} parent=19 // pred_fallthru
          _
        // Predicated region
        $region29: #{tpu_custom_call.1} parent=19 // pred_check
          %p210 = pneg %p112
        $region30: #{tpu_custom_call.1} parent=19 // pred_check_branch
          %212 = sbr.rel (%p210) target = $region32
        $region31: #{tpu_custom_call.1} parent=19 // pred_region
          %s213 = sand.u32 %s19, 1
          %s214 = scalar_lea.sflag [#allocation6], %s213
          %s215 = sand.u32 %s102, 1
          %s216 = smul.addr %s215, 3
          %s217 = scalar_lea.vmem [#allocation7], %s216
          %219 = vsyncadd %s214, 0
          %s220 = smul.addr %s19, 3
          %s221 = scalar_lea.hbm %s3, %s220
          %s223 = sshll.u32 %s221, 4
          %s224 = int_to_ptr.hbm [resolvable:$true] %s223
          %s225 = sshll.u32 %s217, 4
          %s226 = int_to_ptr.vmem [resolvable:$true] %s225
          %228 = dma.hbm_to_vmem [thread:$0]  %s224, 48, %s226, %s214
        $region32: #{tpu_custom_call.1} parent=19 // pred_fallthru
          _
      $region20: #{tpu_custom_call.1} parent=5 // pred_fallthru
        _
      %p229 = scmp.le.s32.totalorder 1, %s19
      %p230 = scmp.lt.s32.totalorder %s19, 3
      %p231 = pnand %p229, %p230
      %p232 = pneg %p231
      // Predicated region
      $region33: #{tpu_custom_call.1} parent=5 // pred_check
        _
      $region34: #{tpu_custom_call.1} parent=5 // pred_check_branch
        %234 = sbr.rel (%p231) target = $region36
      $region35: #{tpu_custom_call.1} parent=5 // pred_region
        %s235 = ssub.s32 %s19, 1
        %s236 = sand.u32 %s53, 1
        %s237 = scalar_lea.sflag [#allocation3], %s236
        %s238 = sand.u32 %s53, 1
        %s239 = smul.addr %s238, 48
        %s240 = scalar_lea.vmem [#allocation2], %s239
        // Predicated region
        $region37: #{tpu_custom_call.1} parent=35 // pred_check
          %p241 = pneg %p66
        $region38: #{tpu_custom_call.1} parent=35 // pred_check_branch
          %243 = sbr.rel (%p241) target = $region40
        $region39: #{tpu_custom_call.1} parent=35 // pred_region
          %245 = dma.done %s237, 768
        $region40: #{tpu_custom_call.1} parent=35 // pred_fallthru
          _
        %s246 = sand.u32 %s24, 1
        %s247 = scalar_lea.sflag [#allocation6], %s246
        %s248 = sand.u32 %s79, 1
        %s249 = smul.addr %s248, 384
        %s250 = scalar_lea.vmem [#allocation5], %s249
        // Predicated region
        $region41: #{tpu_custom_call.1} parent=35 // pred_check
          %p251 = pneg %p92
        $region42: #{tpu_custom_call.1} parent=35 // pred_check_branch
          %253 = sbr.rel (%p251) target = $region44
        $region43: #{tpu_custom_call.1} parent=35 // pred_region
          %255 = dma.done %s247, 6144
        $region44: #{tpu_custom_call.1} parent=35 // pred_fallthru
          _
        %s256 = sand.u32 %s24, 1
        %s257 = scalar_lea.sflag [#allocation6], %s256
        %s258 = sand.u32 %s105, 1
        %s259 = smul.addr %s258, 3
        %s260 = scalar_lea.vmem [#allocation7], %s259
        // Predicated region
        $region45: #{tpu_custom_call.1} parent=35 // pred_check
          %p261 = pneg %p118
        $region46: #{tpu_custom_call.1} parent=35 // pred_check_branch
          %263 = sbr.rel (%p261) target = $region48
        $region47: #{tpu_custom_call.1} parent=35 // pred_region
          %265 = dma.done %s257, 48
        $region48: #{tpu_custom_call.1} parent=35 // pred_fallthru
          _
        %p266 = pneg %p40
        %p267 = pneg %p37
        %s268 = sand.u32 %s53, 1
        %s269 = scalar_lea.sflag [#allocation3], %s268
        %s270 = sand.u32 %s53, 1
        %s271 = smul.addr %s270, 48
        %s272 = scalar_lea.vmem [#allocation2], %s271
        %p273 = pneg %p66
        %p274 = pneg %p63
        %s275 = sand.u32 %s24, 1
        %s276 = scalar_lea.sflag [#allocation6], %s275
        %s277 = sand.u32 %s79, 1
        %s278 = smul.addr %s277, 384
        %s279 = scalar_lea.vmem [#allocation5], %s278
        %p280 = pneg %p92
        %p281 = pneg %p89
        %s282 = sand.u32 %s24, 1
        %s283 = scalar_lea.sflag [#allocation6], %s282
        %s284 = sand.u32 %s105, 1
        %s285 = smul.addr %s284, 3
        %s286 = scalar_lea.vmem [#allocation7], %s285
        %p287 = pneg %p118
        %p288 = pneg %p115
        %p289 = pneg %p144
        %p290 = pneg %p141
        %s291 = sand.u32 %s131, 1
        %s292 = scalar_lea.sflag [#allocation4], %s291
        %s293 = sand.u32 %s131, 1
        %s294 = smul.addr %s293, 16
        %s295 = scalar_lea.vmem [#allocation8], %s294
        %p296 = scmp.eq.s32.totalorder %s24, 1
        %s297 = scalar_select %p296, 7, 0
        %s298 = smul.u32 %s297, 3
        %s299 = smul.addr %s298, 2
        %s300 = scalar_lea.vmem %s240, %s299 [#allocation2]
        %v301 = vld [vmem:[%s300] sm:$0x3f]
        %v302 = vld [vmem:[%s250] sm:$0xff]
        %v303 = vld [vmem:[%s250 + $0x8] sm:$0xff]
        %v304 = vld [vmem:[%s250 + $0x10] sm:$0xff]
        %v305 = vld [vmem:[%s250 + $0x18] sm:$0xff]
        %v306 = vld [vmem:[%s250 + $0x20] sm:$0xff]
        %v307 = vld [vmem:[%s250 + $0x28] sm:$0xff]
        %v308 = vld [vmem:[%s250 + $0x30] sm:$0xff]
        %v309 = vld [vmem:[%s250 + $0x38] sm:$0xff]
        %v310 = vld [vmem:[%s250 + $0x40] sm:$0xff]
        %v311 = vld [vmem:[%s250 + $0x48] sm:$0xff]
        %v312 = vld [vmem:[%s250 + $0x50] sm:$0xff]
        %v313 = vld [vmem:[%s250 + $0x58] sm:$0xff]
        %v314 = vld [vmem:[%s250 + $0x60] sm:$0xff]
        %v315 = vld [vmem:[%s250 + $0x68] sm:$0xff]
        %v316 = vld [vmem:[%s250 + $0x70] sm:$0xff]
        %v317 = vld [vmem:[%s250 + $0x78] sm:$0xff]
        %v318 = vld [vmem:[%s250 + $0x80] sm:$0xff]
        %v319 = vld [vmem:[%s250 + $0x88] sm:$0xff]
        %v320 = vld [vmem:[%s250 + $0x90] sm:$0xff]
        %v321 = vld [vmem:[%s250 + $0x98] sm:$0xff]
        %v322 = vld [vmem:[%s250 + $0xa0] sm:$0xff]
        %v323 = vld [vmem:[%s250 + $0xa8] sm:$0xff]
        %v324 = vld [vmem:[%s250 + $0xb0] sm:$0xff]
        %v325 = vld [vmem:[%s250 + $0xb8] sm:$0xff]
        %v326 = vld [vmem:[%s250 + $0xc0] sm:$0xff]
        %v327 = vld [vmem:[%s250 + $0xc8] sm:$0xff]
        %v328 = vld [vmem:[%s250 + $0xd0] sm:$0xff]
        %v329 = vld [vmem:[%s250 + $0xd8] sm:$0xff]
        %v330 = vld [vmem:[%s250 + $0xe0] sm:$0xff]
        %v331 = vld [vmem:[%s250 + $0xe8] sm:$0xff]
        %v332 = vld [vmem:[%s250 + $0xf0] sm:$0xff]
        %v333 = vld [vmem:[%s250 + $0xf8] sm:$0xff]
        %v334 = vld [vmem:[%s250 + $0x100] sm:$0xff]
        %v335 = vld [vmem:[%s250 + $0x108] sm:$0xff]
        %v336 = vld [vmem:[%s250 + $0x110] sm:$0xff]
        %v337 = vld [vmem:[%s250 + $0x118] sm:$0xff]
        %v338 = vld [vmem:[%s250 + $0x120] sm:$0xff]
        %v339 = vld [vmem:[%s250 + $0x128] sm:$0xff]
        %v340 = vld [vmem:[%s250 + $0x130] sm:$0xff]
        %v341 = vld [vmem:[%s250 + $0x138] sm:$0xff]
        %v342 = vld [vmem:[%s250 + $0x140] sm:$0xff]
        %v343 = vld [vmem:[%s250 + $0x148] sm:$0xff]
        %v344 = vld [vmem:[%s250 + $0x150] sm:$0xff]
        %v345 = vld [vmem:[%s250 + $0x158] sm:$0xff]
        %v346 = vld [vmem:[%s250 + $0x160] sm:$0xff]
        %v347 = vld [vmem:[%s250 + $0x168] sm:$0xff]
        %v348 = vld [vmem:[%s250 + $0x170] sm:$0xff]
        %v349 = vld [vmem:[%s250 + $0x178] sm:$0xff]
        %v350 = vld [vmem:[%s260] sm:$0x7]
        %v352 = vperm.slane %v350, 0
        %v353 = vperm.slane %v350, 1
        %v354 = vperm.slane %v350, 2
        %358 = vmatpush.msra.mxu0 %v347
        %359 = vmatpush.msra.mxu0 %v344
        %360 = vmatpush.msra.mxu0 %v341
        %361 = vmatpush.msra.mxu0 %v338
        %362 = vmatpush.msra.mxu0 %v335
        %363 = vmatpush.msra.mxu0 %v332
        %364 = vmatpush.msra.mxu0 %v329
        %365 = vmatpush.msra.mxu0 %v326
        %366 = vmatpush.msra.mxu0 %v323
        %367 = vmatpush.msra.mxu0 %v320
        %368 = vmatpush.msra.mxu0 %v317
        %369 = vmatpush.msra.mxu0 %v314
        %370 = vmatpush.msra.mxu0 %v311
        %371 = vmatpush.msra.mxu0 %v308
        %372 = vmatpush.msra.mxu0 %v305
        %373 = vmatpush.msra.mxu0 %v302
        %374 = vmatmul.f32.gmra.mxu0 0.0
        %v375 = vpop.f32.mrf.mxu0
        %v376 = vadd.f32 %v352, %v375
        %377 = vdwg.mxu0
        %378 = vmatpush.msra.mxu0 %v348
        %379 = vmatpush.msra.mxu0 %v345
        %380 = vmatpush.msra.mxu0 %v342
        %381 = vmatpush.msra.mxu0 %v339
        %382 = vmatpush.msra.mxu0 %v336
        %383 = vmatpush.msra.mxu0 %v333
        %384 = vmatpush.msra.mxu0 %v330
        %385 = vmatpush.msra.mxu0 %v327
        %386 = vmatpush.msra.mxu0 %v324
        %387 = vmatpush.msra.mxu0 %v321
        %388 = vmatpush.msra.mxu0 %v318
        %389 = vmatpush.msra.mxu0 %v315
        %390 = vmatpush.msra.mxu0 %v312
        %391 = vmatpush.msra.mxu0 %v309
        %392 = vmatpush.msra.mxu0 %v306
        %393 = vmatpush.msra.mxu0 %v303
        %394 = vmatmul.f32.gmra.mxu0 0.0
        %v395 = vpop.f32.mrf.mxu0
        %v396 = vadd.f32 %v353, %v395
        %397 = vdwg.mxu0
        %398 = vmatpush.msra.mxu0 %v349
        %399 = vmatpush.msra.mxu0 %v346
        %400 = vmatpush.msra.mxu0 %v343
        %401 = vmatpush.msra.mxu0 %v340
        %402 = vmatpush.msra.mxu0 %v337
        %403 = vmatpush.msra.mxu0 %v334
        %404 = vmatpush.msra.mxu0 %v331
        %405 = vmatpush.msra.mxu0 %v328
        %406 = vmatpush.msra.mxu0 %v325
        %407 = vmatpush.msra.mxu0 %v322
        %408 = vmatpush.msra.mxu0 %v319
        %409 = vmatpush.msra.mxu0 %v316
        %410 = vmatpush.msra.mxu0 %v313
        %411 = vmatpush.msra.mxu0 %v310
        %412 = vmatpush.msra.mxu0 %v307
        %413 = vmatpush.msra.mxu0 %v304
        %414 = vmatmul.f32.gmra.mxu0 0.0
        %v415 = vpop.f32.mrf.mxu0
        %v416 = vadd.f32 %v354, %v415
        %417 = vdwg.mxu0
        %v418 = vadd.f32 %v301, %v376
        %v419 = vxor.u32 %v418, 2147483648
        %v420 = vmul.f32 %v419, 1.442695
        %v421 = vpow.pop %v420
        %v422 = vadd.f32 %v421, 1.0
        %v423 = vrcp.pop %v422
        %v424 = vmul.f32 %v422, %v423
        %v425 = vsub.f32 1.0, %v424
        %v426 = vmul.f32 %v423, %v425
        %v427 = vadd.f32 %v423, %v426
        %vm428 = vweird.f32 %v422
        %vm429 = vweird.f32 %v423
        %vm430 = vmor %vm428, %vm429
        %v431 = vsel %vm430, %v423, %v427
        %v432 = vand.u32 2147483647, %v422
        %vm433 = vcmp.eq.f32.partialorder %v432, 8.507059e+37
        %v434 = vand.u32 %v422, 2147483648
        %v435 = vor.u32 1.1754944e-38, %v434
        %v436 = vsel %vm433, %v435, %v431
        %v437 = vmul.f32 1.0, %v436
        %v439 = vrot.slane %v301, 2
        %v441 = vadd.f32 %v439, %v396
        %v442 = vxor.u32 %v441, 2147483648
        %v443 = vmul.f32 %v442, 1.442695
        %v444 = vpow.pop %v443
        %v445 = vadd.f32 %v444, 1.0
        %v446 = vrcp.pop %v445
        %v447 = vmul.f32 %v445, %v446
        %v448 = vsub.f32 1.0, %v447
        %v449 = vmul.f32 %v446, %v448
        %v450 = vadd.f32 %v446, %v449
        %vm451 = vweird.f32 %v445
        %vm452 = vweird.f32 %v446
        %vm453 = vmor %vm451, %vm452
        %v454 = vsel %vm453, %v446, %v450
        %v455 = vand.u32 2147483647, %v445
        %vm456 = vcmp.eq.f32.partialorder %v455, 8.507059e+37
        %v457 = vand.u32 %v445, 2147483648
        %v458 = vor.u32 1.1754944e-38, %v457
        %v459 = vsel %vm456, %v458, %v454
        %v460 = vmul.f32 1.0, %v459
        %v461 = vmul.f32 %v437, %v416
        %v462 = vrot.slane %v301, 4
        %v464 = vadd.f32 %v462, %v461
        %v465 = vtanh.pop %v464
        %v466 = vsub.f32 1.0, %v460
        %v467 = vmul.f32 %v466, %v465
        %v468 = vmul.f32 %v460, 0.0
        %v469 = vadd.f32 %v467, %v468
        %v470 = vld [vmem:[%s0] sm:$0x3]
        %v471 = vstv %s297
        %vm472 = vcmp.lt.s32.totalorder %v471, %v470
        %v473 = vsel %vm472, 1, 0
        %474 = vset.pattern.permute.xlu0 0
        %475 = vperm.xlu0 %474, %v473
        %v476 = vpop.permute.xlu0 %475
        %vm477 = vcmp.eq.s32.totalorder %v476, 1
        %v478 = vsel %vm477, %v469, 0.0
        %s479 = smul.u32 %s297, 2
        %s480 = scalar_lea.vmem %s295, %s479 [#allocation8]
        %481 = vst [vmem:[%s480] sm:$0x3] %v478
        %s482 = scalar_select %p296, 6, 1
        %s483 = smul.u32 %s482, 3
        %s484 = smul.addr %s483, 2
        %s485 = scalar_lea.vmem %s240, %s484 [#allocation2]
        %v486 = vld [vmem:[%s485] sm:$0x3f]
        %v487 = vld [vmem:[%s250] sm:$0xff]
        %v488 = vld [vmem:[%s250 + $0x8] sm:$0xff]
        %v489 = vld [vmem:[%s250 + $0x10] sm:$0xff]
        %v490 = vld [vmem:[%s250 + $0x18] sm:$0xff]
        %v491 = vld [vmem:[%s250 + $0x20] sm:$0xff]
        %v492 = vld [vmem:[%s250 + $0x28] sm:$0xff]
        %v493 = vld [vmem:[%s250 + $0x30] sm:$0xff]
        %v494 = vld [vmem:[%s250 + $0x38] sm:$0xff]
        %v495 = vld [vmem:[%s250 + $0x40] sm:$0xff]
        %v496 = vld [vmem:[%s250 + $0x48] sm:$0xff]
        %v497 = vld [vmem:[%s250 + $0x50] sm:$0xff]
        %v498 = vld [vmem:[%s250 + $0x58] sm:$0xff]
        %v499 = vld [vmem:[%s250 + $0x60] sm:$0xff]
        %v500 = vld [vmem:[%s250 + $0x68] sm:$0xff]
        %v501 = vld [vmem:[%s250 + $0x70] sm:$0xff]
        %v502 = vld [vmem:[%s250 + $0x78] sm:$0xff]
        %v503 = vld [vmem:[%s250 + $0x80] sm:$0xff]
        %v504 = vld [vmem:[%s250 + $0x88] sm:$0xff]
        %v505 = vld [vmem:[%s250 + $0x90] sm:$0xff]
        %v506 = vld [vmem:[%s250 + $0x98] sm:$0xff]
        %v507 = vld [vmem:[%s250 + $0xa0] sm:$0xff]
        %v508 = vld [vmem:[%s250 + $0xa8] sm:$0xff]
        %v509 = vld [vmem:[%s250 + $0xb0] sm:$0xff]
        %v510 = vld [vmem:[%s250 + $0xb8] sm:$0xff]
        %v511 = vld [vmem:[%s250 + $0xc0] sm:$0xff]
        %v512 = vld [vmem:[%s250 + $0xc8] sm:$0xff]
        %v513 = vld [vmem:[%s250 + $0xd0] sm:$0xff]
        %v514 = vld [vmem:[%s250 + $0xd8] sm:$0xff]
        %v515 = vld [vmem:[%s250 + $0xe0] sm:$0xff]
        %v516 = vld [vmem:[%s250 + $0xe8] sm:$0xff]
        %v517 = vld [vmem:[%s250 + $0xf0] sm:$0xff]
        %v518 = vld [vmem:[%s250 + $0xf8] sm:$0xff]
        %v519 = vld [vmem:[%s250 + $0x100] sm:$0xff]
        %v520 = vld [vmem:[%s250 + $0x108] sm:$0xff]
        %v521 = vld [vmem:[%s250 + $0x110] sm:$0xff]
        %v522 = vld [vmem:[%s250 + $0x118] sm:$0xff]
        %v523 = vld [vmem:[%s250 + $0x120] sm:$0xff]
        %v524 = vld [vmem:[%s250 + $0x128] sm:$0xff]
        %v525 = vld [vmem:[%s250 + $0x130] sm:$0xff]
        %v526 = vld [vmem:[%s250 + $0x138] sm:$0xff]
        %v527 = vld [vmem:[%s250 + $0x140] sm:$0xff]
        %v528 = vld [vmem:[%s250 + $0x148] sm:$0xff]
        %v529 = vld [vmem:[%s250 + $0x150] sm:$0xff]
        %v530 = vld [vmem:[%s250 + $0x158] sm:$0xff]
        %v531 = vld [vmem:[%s250 + $0x160] sm:$0xff]
        %v532 = vld [vmem:[%s250 + $0x168] sm:$0xff]
        %v533 = vld [vmem:[%s250 + $0x170] sm:$0xff]
        %v534 = vld [vmem:[%s250 + $0x178] sm:$0xff]
        %v535 = vld [vmem:[%s260] sm:$0x7]
        %v537 = vperm.slane %v535, 0
        %v538 = vperm.slane %v535, 1
        %v539 = vperm.slane %v535, 2
        %543 = vmatpush.msra.mxu0 %v532
        %544 = vmatpush.msra.mxu0 %v529
        %545 = vmatpush.msra.mxu0 %v526
        %546 = vmatpush.msra.mxu0 %v523
        %547 = vmatpush.msra.mxu0 %v520
        %548 = vmatpush.msra.mxu0 %v517
        %549 = vmatpush.msra.mxu0 %v514
        %550 = vmatpush.msra.mxu0 %v511
        %551 = vmatpush.msra.mxu0 %v508
        %552 = vmatpush.msra.mxu0 %v505
        %553 = vmatpush.msra.mxu0 %v502
        %554 = vmatpush.msra.mxu0 %v499
        %555 = vmatpush.msra.mxu0 %v496
        %556 = vmatpush.msra.mxu0 %v493
        %557 = vmatpush.msra.mxu0 %v490
        %558 = vmatpush.msra.mxu0 %v487
        %559 = vmatmul.f32.gmra.mxu0 %v478
        %v560 = vpop.f32.mrf.mxu0
        %v561 = vadd.f32 %v537, %v560
        %562 = vdwg.mxu0
        %563 = vmatpush.msra.mxu0 %v533
        %564 = vmatpush.msra.mxu0 %v530
        %565 = vmatpush.msra.mxu0 %v527
        %566 = vmatpush.msra.mxu0 %v524
        %567 = vmatpush.msra.mxu0 %v521
        %568 = vmatpush.msra.mxu0 %v518
        %569 = vmatpush.msra.mxu0 %v515
        %570 = vmatpush.msra.mxu0 %v512
        %571 = vmatpush.msra.mxu0 %v509
        %572 = vmatpush.msra.mxu0 %v506
        %573 = vmatpush.msra.mxu0 %v503
        %574 = vmatpush.msra.mxu0 %v500
        %575 = vmatpush.msra.mxu0 %v497
        %576 = vmatpush.msra.mxu0 %v494
        %577 = vmatpush.msra.mxu0 %v491
        %578 = vmatpush.msra.mxu0 %v488
        %579 = vmatmul.f32.gmra.mxu0 %v478
        %v580 = vpop.f32.mrf.mxu0
        %v581 = vadd.f32 %v538, %v580
        %582 = vdwg.mxu0
        %583 = vmatpush.msra.mxu0 %v534
        %584 = vmatpush.msra.mxu0 %v531
        %585 = vmatpush.msra.mxu0 %v528
        %586 = vmatpush.msra.mxu0 %v525
        %587 = vmatpush.msra.mxu0 %v522
        %588 = vmatpush.msra.mxu0 %v519
        %589 = vmatpush.msra.mxu0 %v516
        %590 = vmatpush.msra.mxu0 %v513
        %591 = vmatpush.msra.mxu0 %v510
        %592 = vmatpush.msra.mxu0 %v507
        %593 = vmatpush.msra.mxu0 %v504
        %594 = vmatpush.msra.mxu0 %v501
        %595 = vmatpush.msra.mxu0 %v498
        %596 = vmatpush.msra.mxu0 %v495
        %597 = vmatpush.msra.mxu0 %v492
        %598 = vmatpush.msra.mxu0 %v489
        %599 = vmatmul.f32.gmra.mxu0 %v478
        %v600 = vpop.f32.mrf.mxu0
        %v601 = vadd.f32 %v539, %v600
        %602 = vdwg.mxu0
        %v603 = vadd.f32 %v486, %v561
        %v604 = vxor.u32 %v603, 2147483648
        %v605 = vmul.f32 %v604, 1.442695
        %v606 = vpow.pop %v605
        %v607 = vadd.f32 %v606, 1.0
        %v608 = vrcp.pop %v607
        %v609 = vmul.f32 %v607, %v608
        %v610 = vsub.f32 1.0, %v609
        %v611 = vmul.f32 %v608, %v610
        %v612 = vadd.f32 %v608, %v611
        %vm613 = vweird.f32 %v607
        %vm614 = vweird.f32 %v608
        %vm615 = vmor %vm613, %vm614
        %v616 = vsel %vm615, %v608, %v612
        %v617 = vand.u32 2147483647, %v607
        %vm618 = vcmp.eq.f32.partialorder %v617, 8.507059e+37
        %v619 = vand.u32 %v607, 2147483648
        %v620 = vor.u32 1.1754944e-38, %v619
        %v621 = vsel %vm618, %v620, %v616
        %v622 = vmul.f32 1.0, %v621
        %v624 = vrot.slane %v486, 2
        %v626 = vadd.f32 %v624, %v581
        %v627 = vxor.u32 %v626, 2147483648
        %v628 = vmul.f32 %v627, 1.442695
        %v629 = vpow.pop %v628
        %v630 = vadd.f32 %v629, 1.0
        %v631 = vrcp.pop %v630
        %v632 = vmul.f32 %v630, %v631
        %v633 = vsub.f32 1.0, %v632
        %v634 = vmul.f32 %v631, %v633
        %v635 = vadd.f32 %v631, %v634
        %vm636 = vweird.f32 %v630
        %vm637 = vweird.f32 %v631
        %vm638 = vmor %vm636, %vm637
        %v639 = vsel %vm638, %v631, %v635
        %v640 = vand.u32 2147483647, %v630
        %vm641 = vcmp.eq.f32.partialorder %v640, 8.507059e+37
        %v642 = vand.u32 %v630, 2147483648
        %v643 = vor.u32 1.1754944e-38, %v642
        %v644 = vsel %vm641, %v643, %v639
        %v645 = vmul.f32 1.0, %v644
        %v646 = vmul.f32 %v622, %v601
        %v647 = vrot.slane %v486, 4
        %v649 = vadd.f32 %v647, %v646
        %v650 = vtanh.pop %v649
        %v651 = vsub.f32 1.0, %v645
        %v652 = vmul.f32 %v651, %v650
        %v653 = vmul.f32 %v645, %v478
        %v654 = vadd.f32 %v652, %v653
        %v655 = vld [vmem:[%s0] sm:$0x3]
        %v656 = vstv %s482
        %vm657 = vcmp.lt.s32.totalorder %v656, %v655
        %v658 = vsel %vm657, 1, 0
        %659 = vset.pattern.permute.xlu0 0
        %660 = vperm.xlu0 %659, %v658
        %v661 = vpop.permute.xlu0 %660
        %vm662 = vcmp.eq.s32.totalorder %v661, 1
        %v663 = vsel %vm662, %v654, 0.0
        %s664 = smul.u32 %s482, 2
        %s665 = scalar_lea.vmem %s295, %s664 [#allocation8]
        %666 = vst [vmem:[%s665] sm:$0x3] %v663
        %v667 = vsel %vm662, %v654, %v478
        %s668 = scalar_select %p296, 5, 2
        %s669 = smul.u32 %s668, 3
        %s670 = smul.addr %s669, 2
        %s671 = scalar_lea.vmem %s240, %s670 [#allocation2]
        %v672 = vld [vmem:[%s671] sm:$0x3f]
        %v673 = vld [vmem:[%s250] sm:$0xff]
        %v674 = vld [vmem:[%s250 + $0x8] sm:$0xff]
        %v675 = vld [vmem:[%s250 + $0x10] sm:$0xff]
        %v676 = vld [vmem:[%s250 + $0x18] sm:$0xff]
        %v677 = vld [vmem:[%s250 + $0x20] sm:$0xff]
        %v678 = vld [vmem:[%s250 + $0x28] sm:$0xff]
        %v679 = vld [vmem:[%s250 + $0x30] sm:$0xff]
        %v680 = vld [vmem:[%s250 + $0x38] sm:$0xff]
        %v681 = vld [vmem:[%s250 + $0x40] sm:$0xff]
        %v682 = vld [vmem:[%s250 + $0x48] sm:$0xff]
        %v683 = vld [vmem:[%s250 + $0x50] sm:$0xff]
        %v684 = vld [vmem:[%s250 + $0x58] sm:$0xff]
        %v685 = vld [vmem:[%s250 + $0x60] sm:$0xff]
        %v686 = vld [vmem:[%s250 + $0x68] sm:$0xff]
        %v687 = vld [vmem:[%s250 + $0x70] sm:$0xff]
        %v688 = vld [vmem:[%s250 + $0x78] sm:$0xff]
        %v689 = vld [vmem:[%s250 + $0x80] sm:$0xff]
        %v690 = vld [vmem:[%s250 + $0x88] sm:$0xff]
        %v691 = vld [vmem:[%s250 + $0x90] sm:$0xff]
        %v692 = vld [vmem:[%s250 + $0x98] sm:$0xff]
        %v693 = vld [vmem:[%s250 + $0xa0] sm:$0xff]
        %v694 = vld [vmem:[%s250 + $0xa8] sm:$0xff]
        %v695 = vld [vmem:[%s250 + $0xb0] sm:$0xff]
        %v696 = vld [vmem:[%s250 + $0xb8] sm:$0xff]
        %v697 = vld [vmem:[%s250 + $0xc0] sm:$0xff]
        %v698 = vld [vmem:[%s250 + $0xc8] sm:$0xff]
        %v699 = vld [vmem:[%s250 + $0xd0] sm:$0xff]
        %v700 = vld [vmem:[%s250 + $0xd8] sm:$0xff]
        %v701 = vld [vmem:[%s250 + $0xe0] sm:$0xff]
        %v702 = vld [vmem:[%s250 + $0xe8] sm:$0xff]
        %v703 = vld [vmem:[%s250 + $0xf0] sm:$0xff]
        %v704 = vld [vmem:[%s250 + $0xf8] sm:$0xff]
        %v705 = vld [vmem:[%s250 + $0x100] sm:$0xff]
        %v706 = vld [vmem:[%s250 + $0x108] sm:$0xff]
        %v707 = vld [vmem:[%s250 + $0x110] sm:$0xff]
        %v708 = vld [vmem:[%s250 + $0x118] sm:$0xff]
        %v709 = vld [vmem:[%s250 + $0x120] sm:$0xff]
        %v710 = vld [vmem:[%s250 + $0x128] sm:$0xff]
        %v711 = vld [vmem:[%s250 + $0x130] sm:$0xff]
        %v712 = vld [vmem:[%s250 + $0x138] sm:$0xff]
        %v713 = vld [vmem:[%s250 + $0x140] sm:$0xff]
        %v714 = vld [vmem:[%s250 + $0x148] sm:$0xff]
        %v715 = vld [vmem:[%s250 + $0x150] sm:$0xff]
        %v716 = vld [vmem:[%s250 + $0x158] sm:$0xff]
        %v717 = vld [vmem:[%s250 + $0x160] sm:$0xff]
        %v718 = vld [vmem:[%s250 + $0x168] sm:$0xff]
        %v719 = vld [vmem:[%s250 + $0x170] sm:$0xff]
        %v720 = vld [vmem:[%s250 + $0x178] sm:$0xff]
        %v721 = vld [vmem:[%s260] sm:$0x7]
        %v723 = vperm.slane %v721, 0
        %v724 = vperm.slane %v721, 1
        %v725 = vperm.slane %v721, 2
        %729 = vmatpush.msra.mxu0 %v718
        %730 = vmatpush.msra.mxu0 %v715
        %731 = vmatpush.msra.mxu0 %v712
        %732 = vmatpush.msra.mxu0 %v709
        %733 = vmatpush.msra.mxu0 %v706
        %734 = vmatpush.msra.mxu0 %v703
        %735 = vmatpush.msra.mxu0 %v700
        %736 = vmatpush.msra.mxu0 %v697
        %737 = vmatpush.msra.mxu0 %v694
        %738 = vmatpush.msra.mxu0 %v691
        %739 = vmatpush.msra.mxu0 %v688
        %740 = vmatpush.msra.mxu0 %v685
        %741 = vmatpush.msra.mxu0 %v682
        %742 = vmatpush.msra.mxu0 %v679
        %743 = vmatpush.msra.mxu0 %v676
        %744 = vmatpush.msra.mxu0 %v673
        %745 = vmatmul.f32.gmra.mxu0 %v667
        %v746 = vpop.f32.mrf.mxu0
        %v747 = vadd.f32 %v723, %v746
        %748 = vdwg.mxu0
        %749 = vmatpush.msra.mxu0 %v719
        %750 = vmatpush.msra.mxu0 %v716
        %751 = vmatpush.msra.mxu0 %v713
        %752 = vmatpush.msra.mxu0 %v710
        %753 = vmatpush.msra.mxu0 %v707
        %754 = vmatpush.msra.mxu0 %v704
        %755 = vmatpush.msra.mxu0 %v701
        %756 = vmatpush.msra.mxu0 %v698
        %757 = vmatpush.msra.mxu0 %v695
        %758 = vmatpush.msra.mxu0 %v692
        %759 = vmatpush.msra.mxu0 %v689
        %760 = vmatpush.msra.mxu0 %v686
        %761 = vmatpush.msra.mxu0 %v683
        %762 = vmatpush.msra.mxu0 %v680
        %763 = vmatpush.msra.mxu0 %v677
        %764 = vmatpush.msra.mxu0 %v674
        %765 = vmatmul.f32.gmra.mxu0 %v667
        %v766 = vpop.f32.mrf.mxu0
        %v767 = vadd.f32 %v724, %v766
        %768 = vdwg.mxu0
        %769 = vmatpush.msra.mxu0 %v720
        %770 = vmatpush.msra.mxu0 %v717
        %771 = vmatpush.msra.mxu0 %v714
        %772 = vmatpush.msra.mxu0 %v711
        %773 = vmatpush.msra.mxu0 %v708
        %774 = vmatpush.msra.mxu0 %v705
        %775 = vmatpush.msra.mxu0 %v702
        %776 = vmatpush.msra.mxu0 %v699
        %777 = vmatpush.msra.mxu0 %v696
        %778 = vmatpush.msra.mxu0 %v693
        %779 = vmatpush.msra.mxu0 %v690
        %780 = vmatpush.msra.mxu0 %v687
        %781 = vmatpush.msra.mxu0 %v684
        %782 = vmatpush.msra.mxu0 %v681
        %783 = vmatpush.msra.mxu0 %v678
        %784 = vmatpush.msra.mxu0 %v675
        %785 = vmatmul.f32.gmra.mxu0 %v667
        %v786 = vpop.f32.mrf.mxu0
        %v787 = vadd.f32 %v725, %v786
        %788 = vdwg.mxu0
        %v789 = vadd.f32 %v672, %v747
        %v790 = vxor.u32 %v789, 2147483648
        %v791 = vmul.f32 %v790, 1.442695
        %v792 = vpow.pop %v791
        %v793 = vadd.f32 %v792, 1.0
        %v794 = vrcp.pop %v793
        %v795 = vmul.f32 %v793, %v794
        %v796 = vsub.f32 1.0, %v795
        %v797 = vmul.f32 %v794, %v796
        %v798 = vadd.f32 %v794, %v797
        %vm799 = vweird.f32 %v793
        %vm800 = vweird.f32 %v794
        %vm801 = vmor %vm799, %vm800
        %v802 = vsel %vm801, %v794, %v798
        %v803 = vand.u32 2147483647, %v793
        %vm804 = vcmp.eq.f32.partialorder %v803, 8.507059e+37
        %v805 = vand.u32 %v793, 2147483648
        %v806 = vor.u32 1.1754944e-38, %v805
        %v807 = vsel %vm804, %v806, %v802
        %v808 = vmul.f32 1.0, %v807
        %v810 = vrot.slane %v672, 2
        %v812 = vadd.f32 %v810, %v767
        %v813 = vxor.u32 %v812, 2147483648
        %v814 = vmul.f32 %v813, 1.442695
        %v815 = vpow.pop %v814
        %v816 = vadd.f32 %v815, 1.0
        %v817 = vrcp.pop %v816
        %v818 = vmul.f32 %v816, %v817
        %v819 = vsub.f32 1.0, %v818
        %v820 = vmul.f32 %v817, %v819
        %v821 = vadd.f32 %v817, %v820
        %vm822 = vweird.f32 %v816
        %vm823 = vweird.f32 %v817
        %vm824 = vmor %vm822, %vm823
        %v825 = vsel %vm824, %v817, %v821
        %v826 = vand.u32 2147483647, %v816
        %vm827 = vcmp.eq.f32.partialorder %v826, 8.507059e+37
        %v828 = vand.u32 %v816, 2147483648
        %v829 = vor.u32 1.1754944e-38, %v828
        %v830 = vsel %vm827, %v829, %v825
        %v831 = vmul.f32 1.0, %v830
        %v832 = vmul.f32 %v808, %v787
        %v833 = vrot.slane %v672, 4
        %v835 = vadd.f32 %v833, %v832
        %v836 = vtanh.pop %v835
        %v837 = vsub.f32 1.0, %v831
        %v838 = vmul.f32 %v837, %v836
        %v839 = vmul.f32 %v831, %v667
        %v840 = vadd.f32 %v838, %v839
        %v841 = vld [vmem:[%s0] sm:$0x3]
        %v842 = vstv %s668
        %vm843 = vcmp.lt.s32.totalorder %v842, %v841
        %v844 = vsel %vm843, 1, 0
        %845 = vset.pattern.permute.xlu0 0
        %846 = vperm.xlu0 %845, %v844
        %v847 = vpop.permute.xlu0 %846
        %vm848 = vcmp.eq.s32.totalorder %v847, 1
        %v849 = vsel %vm848, %v840, 0.0
        %s850 = smul.u32 %s668, 2
        %s851 = scalar_lea.vmem %s295, %s850 [#allocation8]
        %852 = vst [vmem:[%s851] sm:$0x3] %v849
        %v853 = vsel %vm848, %v840, %v667
        %s854 = scalar_select %p296, 4, 3
        %s855 = smul.u32 %s854, 3
        %s856 = smul.addr %s855, 2
        %s857 = scalar_lea.vmem %s240, %s856 [#allocation2]
        %v858 = vld [vmem:[%s857] sm:$0x3f]
        %v859 = vld [vmem:[%s250] sm:$0xff]
        %v860 = vld [vmem:[%s250 + $0x8] sm:$0xff]
        %v861 = vld [vmem:[%s250 + $0x10] sm:$0xff]
        %v862 = vld [vmem:[%s250 + $0x18] sm:$0xff]
        %v863 = vld [vmem:[%s250 + $0x20] sm:$0xff]
        %v864 = vld [vmem:[%s250 + $0x28] sm:$0xff]
        %v865 = vld [vmem:[%s250 + $0x30] sm:$0xff]
        %v866 = vld [vmem:[%s250 + $0x38] sm:$0xff]
        %v867 = vld [vmem:[%s250 + $0x40] sm:$0xff]
        %v868 = vld [vmem:[%s250 + $0x48] sm:$0xff]
        %v869 = vld [vmem:[%s250 + $0x50] sm:$0xff]
        %v870 = vld [vmem:[%s250 + $0x58] sm:$0xff]
        %v871 = vld [vmem:[%s250 + $0x60] sm:$0xff]
        %v872 = vld [vmem:[%s250 + $0x68] sm:$0xff]
        %v873 = vld [vmem:[%s250 + $0x70] sm:$0xff]
        %v874 = vld [vmem:[%s250 + $0x78] sm:$0xff]
        %v875 = vld [vmem:[%s250 + $0x80] sm:$0xff]
        %v876 = vld [vmem:[%s250 + $0x88] sm:$0xff]
        %v877 = vld [vmem:[%s250 + $0x90] sm:$0xff]
        %v878 = vld [vmem:[%s250 + $0x98] sm:$0xff]
        %v879 = vld [vmem:[%s250 + $0xa0] sm:$0xff]
        %v880 = vld [vmem:[%s250 + $0xa8] sm:$0xff]
        %v881 = vld [vmem:[%s250 + $0xb0] sm:$0xff]
        %v882 = vld [vmem:[%s250 + $0xb8] sm:$0xff]
        %v883 = vld [vmem:[%s250 + $0xc0] sm:$0xff]
        %v884 = vld [vmem:[%s250 + $0xc8] sm:$0xff]
        %v885 = vld [vmem:[%s250 + $0xd0] sm:$0xff]
        %v886 = vld [vmem:[%s250 + $0xd8] sm:$0xff]
        %v887 = vld [vmem:[%s250 + $0xe0] sm:$0xff]
        %v888 = vld [vmem:[%s250 + $0xe8] sm:$0xff]
        %v889 = vld [vmem:[%s250 + $0xf0] sm:$0xff]
        %v890 = vld [vmem:[%s250 + $0xf8] sm:$0xff]
        %v891 = vld [vmem:[%s250 + $0x100] sm:$0xff]
        %v892 = vld [vmem:[%s250 + $0x108] sm:$0xff]
        %v893 = vld [vmem:[%s250 + $0x110] sm:$0xff]
        %v894 = vld [vmem:[%s250 + $0x118] sm:$0xff]
        %v895 = vld [vmem:[%s250 + $0x120] sm:$0xff]
        %v896 = vld [vmem:[%s250 + $0x128] sm:$0xff]
        %v897 = vld [vmem:[%s250 + $0x130] sm:$0xff]
        %v898 = vld [vmem:[%s250 + $0x138] sm:$0xff]
        %v899 = vld [vmem:[%s250 + $0x140] sm:$0xff]
        %v900 = vld [vmem:[%s250 + $0x148] sm:$0xff]
        %v901 = vld [vmem:[%s250 + $0x150] sm:$0xff]
        %v902 = vld [vmem:[%s250 + $0x158] sm:$0xff]
        %v903 = vld [vmem:[%s250 + $0x160] sm:$0xff]
        %v904 = vld [vmem:[%s250 + $0x168] sm:$0xff]
        %v905 = vld [vmem:[%s250 + $0x170] sm:$0xff]
        %v906 = vld [vmem:[%s250 + $0x178] sm:$0xff]
        %v907 = vld [vmem:[%s260] sm:$0x7]
        %v909 = vperm.slane %v907, 0
        %v910 = vperm.slane %v907, 1
        %v911 = vperm.slane %v907, 2
        %915 = vmatpush.msra.mxu0 %v904
        %916 = vmatpush.msra.mxu0 %v901
        %917 = vmatpush.msra.mxu0 %v898
        %918 = vmatpush.msra.mxu0 %v895
        %919 = vmatpush.msra.mxu0 %v892
        %920 = vmatpush.msra.mxu0 %v889
        %921 = vmatpush.msra.mxu0 %v886
        %922 = vmatpush.msra.mxu0 %v883
        %923 = vmatpush.msra.mxu0 %v880
        %924 = vmatpush.msra.mxu0 %v877
        %925 = vmatpush.msra.mxu0 %v874
        %926 = vmatpush.msra.mxu0 %v871
        %927 = vmatpush.msra.mxu0 %v868
        %928 = vmatpush.msra.mxu0 %v865
        %929 = vmatpush.msra.mxu0 %v862
        %930 = vmatpush.msra.mxu0 %v859
        %931 = vmatmul.f32.gmra.mxu0 %v853
        %v932 = vpop.f32.mrf.mxu0
        %v933 = vadd.f32 %v909, %v932
        %934 = vdwg.mxu0
        %935 = vmatpush.msra.mxu0 %v905
        %936 = vmatpush.msra.mxu0 %v902
        %937 = vmatpush.msra.mxu0 %v899
        %938 = vmatpush.msra.mxu0 %v896
        %939 = vmatpush.msra.mxu0 %v893
        %940 = vmatpush.msra.mxu0 %v890
        %941 = vmatpush.msra.mxu0 %v887
        %942 = vmatpush.msra.mxu0 %v884
        %943 = vmatpush.msra.mxu0 %v881
        %944 = vmatpush.msra.mxu0 %v878
        %945 = vmatpush.msra.mxu0 %v875
        %946 = vmatpush.msra.mxu0 %v872
        %947 = vmatpush.msra.mxu0 %v869
        %948 = vmatpush.msra.mxu0 %v866
        %949 = vmatpush.msra.mxu0 %v863
        %950 = vmatpush.msra.mxu0 %v860
        %951 = vmatmul.f32.gmra.mxu0 %v853
        %v952 = vpop.f32.mrf.mxu0
        %v953 = vadd.f32 %v910, %v952
        %954 = vdwg.mxu0
        %955 = vmatpush.msra.mxu0 %v906
        %956 = vmatpush.msra.mxu0 %v903
        %957 = vmatpush.msra.mxu0 %v900
        %958 = vmatpush.msra.mxu0 %v897
        %959 = vmatpush.msra.mxu0 %v894
        %960 = vmatpush.msra.mxu0 %v891
        %961 = vmatpush.msra.mxu0 %v888
        %962 = vmatpush.msra.mxu0 %v885
        %963 = vmatpush.msra.mxu0 %v882
        %964 = vmatpush.msra.mxu0 %v879
        %965 = vmatpush.msra.mxu0 %v876
        %966 = vmatpush.msra.mxu0 %v873
        %967 = vmatpush.msra.mxu0 %v870
        %968 = vmatpush.msra.mxu0 %v867
        %969 = vmatpush.msra.mxu0 %v864
        %970 = vmatpush.msra.mxu0 %v861
        %971 = vmatmul.f32.gmra.mxu0 %v853
        %v972 = vpop.f32.mrf.mxu0
        %v973 = vadd.f32 %v911, %v972
        %974 = vdwg.mxu0
        %v975 = vadd.f32 %v858, %v933
        %v976 = vxor.u32 %v975, 2147483648
        %v977 = vmul.f32 %v976, 1.442695
        %v978 = vpow.pop %v977
        %v979 = vadd.f32 %v978, 1.0
        %v980 = vrcp.pop %v979
        %v981 = vmul.f32 %v979, %v980
        %v982 = vsub.f32 1.0, %v981
        %v983 = vmul.f32 %v980, %v982
        %v984 = vadd.f32 %v980, %v983
        %vm985 = vweird.f32 %v979
        %vm986 = vweird.f32 %v980
        %vm987 = vmor %vm985, %vm986
        %v988 = vsel %vm987, %v980, %v984
        %v989 = vand.u32 2147483647, %v979
        %vm990 = vcmp.eq.f32.partialorder %v989, 8.507059e+37
        %v991 = vand.u32 %v979, 2147483648
        %v992 = vor.u32 1.1754944e-38, %v991
        %v993 = vsel %vm990, %v992, %v988
        %v994 = vmul.f32 1.0, %v993
        %v996 = vrot.slane %v858, 2
        %v998 = vadd.f32 %v996, %v953
        %v999 = vxor.u32 %v998, 2147483648
        %v1000 = vmul.f32 %v999, 1.442695
        %v1001 = vpow.pop %v1000
        %v1002 = vadd.f32 %v1001, 1.0
        %v1003 = vrcp.pop %v1002
        %v1004 = vmul.f32 %v1002, %v1003
        %v1005 = vsub.f32 1.0, %v1004
        %v1006 = vmul.f32 %v1003, %v1005
        %v1007 = vadd.f32 %v1003, %v1006
        %vm1008 = vweird.f32 %v1002
        %vm1009 = vweird.f32 %v1003
        %vm1010 = vmor %vm1008, %vm1009
        %v1011 = vsel %vm1010, %v1003, %v1007
        %v1012 = vand.u32 2147483647, %v1002
        %vm1013 = vcmp.eq.f32.partialorder %v1012, 8.507059e+37
        %v1014 = vand.u32 %v1002, 2147483648
        %v1015 = vor.u32 1.1754944e-38, %v1014
        %v1016 = vsel %vm1013, %v1015, %v1011
        %v1017 = vmul.f32 1.0, %v1016
        %v1018 = vmul.f32 %v994, %v973
        %v1019 = vrot.slane %v858, 4
        %v1021 = vadd.f32 %v1019, %v1018
        %v1022 = vtanh.pop %v1021
        %v1023 = vsub.f32 1.0, %v1017
        %v1024 = vmul.f32 %v1023, %v1022
        %v1025 = vmul.f32 %v1017, %v853
        %v1026 = vadd.f32 %v1024, %v1025
        %v1027 = vld [vmem:[%s0] sm:$0x3]
        %v1028 = vstv %s854
        %vm1029 = vcmp.lt.s32.totalorder %v1028, %v1027
        %v1030 = vsel %vm1029, 1, 0
        %1031 = vset.pattern.permute.xlu0 0
        %1032 = vperm.xlu0 %1031, %v1030
        %v1033 = vpop.permute.xlu0 %1032
        %vm1034 = vcmp.eq.s32.totalorder %v1033, 1
        %v1035 = vsel %vm1034, %v1026, 0.0
        %s1036 = smul.u32 %s854, 2
        %s1037 = scalar_lea.vmem %s295, %s1036 [#allocation8]
        %1038 = vst [vmem:[%s1037] sm:$0x3] %v1035
        %v1039 = vsel %vm1034, %v1026, %v853
        %s1040 = scalar_select %p296, 3, 4
        %s1041 = smul.u32 %s1040, 3
        %s1042 = smul.addr %s1041, 2
        %s1043 = scalar_lea.vmem %s240, %s1042 [#allocation2]
        %v1044 = vld [vmem:[%s1043] sm:$0x3f]
        %v1045 = vld [vmem:[%s250] sm:$0xff]
        %v1046 = vld [vmem:[%s250 + $0x8] sm:$0xff]
        %v1047 = vld [vmem:[%s250 + $0x10] sm:$0xff]
        %v1048 = vld [vmem:[%s250 + $0x18] sm:$0xff]
        %v1049 = vld [vmem:[%s250 + $0x20] sm:$0xff]
        %v1050 = vld [vmem:[%s250 + $0x28] sm:$0xff]
        %v1051 = vld [vmem:[%s250 + $0x30] sm:$0xff]
        %v1052 = vld [vmem:[%s250 + $0x38] sm:$0xff]
        %v1053 = vld [vmem:[%s250 + $0x40] sm:$0xff]
        %v1054 = vld [vmem:[%s250 + $0x48] sm:$0xff]
        %v1055 = vld [vmem:[%s250 + $0x50] sm:$0xff]
        %v1056 = vld [vmem:[%s250 + $0x58] sm:$0xff]
        %v1057 = vld [vmem:[%s250 + $0x60] sm:$0xff]
        %v1058 = vld [vmem:[%s250 + $0x68] sm:$0xff]
        %v1059 = vld [vmem:[%s250 + $0x70] sm:$0xff]
        %v1060 = vld [vmem:[%s250 + $0x78] sm:$0xff]
        %v1061 = vld [vmem:[%s250 + $0x80] sm:$0xff]
        %v1062 = vld [vmem:[%s250 + $0x88] sm:$0xff]
        %v1063 = vld [vmem:[%s250 + $0x90] sm:$0xff]
        %v1064 = vld [vmem:[%s250 + $0x98] sm:$0xff]
        %v1065 = vld [vmem:[%s250 + $0xa0] sm:$0xff]
        %v1066 = vld [vmem:[%s250 + $0xa8] sm:$0xff]
        %v1067 = vld [vmem:[%s250 + $0xb0] sm:$0xff]
        %v1068 = vld [vmem:[%s250 + $0xb8] sm:$0xff]
        %v1069 = vld [vmem:[%s250 + $0xc0] sm:$0xff]
        %v1070 = vld [vmem:[%s250 + $0xc8] sm:$0xff]
        %v1071 = vld [vmem:[%s250 + $0xd0] sm:$0xff]
        %v1072 = vld [vmem:[%s250 + $0xd8] sm:$0xff]
        %v1073 = vld [vmem:[%s250 + $0xe0] sm:$0xff]
        %v1074 = vld [vmem:[%s250 + $0xe8] sm:$0xff]
        %v1075 = vld [vmem:[%s250 + $0xf0] sm:$0xff]
        %v1076 = vld [vmem:[%s250 + $0xf8] sm:$0xff]
        %v1077 = vld [vmem:[%s250 + $0x100] sm:$0xff]
        %v1078 = vld [vmem:[%s250 + $0x108] sm:$0xff]
        %v1079 = vld [vmem:[%s250 + $0x110] sm:$0xff]
        %v1080 = vld [vmem:[%s250 + $0x118] sm:$0xff]
        %v1081 = vld [vmem:[%s250 + $0x120] sm:$0xff]
        %v1082 = vld [vmem:[%s250 + $0x128] sm:$0xff]
        %v1083 = vld [vmem:[%s250 + $0x130] sm:$0xff]
        %v1084 = vld [vmem:[%s250 + $0x138] sm:$0xff]
        %v1085 = vld [vmem:[%s250 + $0x140] sm:$0xff]
        %v1086 = vld [vmem:[%s250 + $0x148] sm:$0xff]
        %v1087 = vld [vmem:[%s250 + $0x150] sm:$0xff]
        %v1088 = vld [vmem:[%s250 + $0x158] sm:$0xff]
        %v1089 = vld [vmem:[%s250 + $0x160] sm:$0xff]
        %v1090 = vld [vmem:[%s250 + $0x168] sm:$0xff]
        %v1091 = vld [vmem:[%s250 + $0x170] sm:$0xff]
        %v1092 = vld [vmem:[%s250 + $0x178] sm:$0xff]
        %v1093 = vld [vmem:[%s260] sm:$0x7]
        %v1095 = vperm.slane %v1093, 0
        %v1096 = vperm.slane %v1093, 1
        %v1097 = vperm.slane %v1093, 2
        %1101 = vmatpush.msra.mxu0 %v1090
        %1102 = vmatpush.msra.mxu0 %v1087
        %1103 = vmatpush.msra.mxu0 %v1084
        %1104 = vmatpush.msra.mxu0 %v1081
        %1105 = vmatpush.msra.mxu0 %v1078
        %1106 = vmatpush.msra.mxu0 %v1075
        %1107 = vmatpush.msra.mxu0 %v1072
        %1108 = vmatpush.msra.mxu0 %v1069
        %1109 = vmatpush.msra.mxu0 %v1066
        %1110 = vmatpush.msra.mxu0 %v1063
        %1111 = vmatpush.msra.mxu0 %v1060
        %1112 = vmatpush.msra.mxu0 %v1057
        %1113 = vmatpush.msra.mxu0 %v1054
        %1114 = vmatpush.msra.mxu0 %v1051
        %1115 = vmatpush.msra.mxu0 %v1048
        %1116 = vmatpush.msra.mxu0 %v1045
        %1117 = vmatmul.f32.gmra.mxu0 %v1039
        %v1118 = vpop.f32.mrf.mxu0
        %v1119 = vadd.f32 %v1095, %v1118
        %1120 = vdwg.mxu0
        %1121 = vmatpush.msra.mxu0 %v1091
        %1122 = vmatpush.msra.mxu0 %v1088
        %1123 = vmatpush.msra.mxu0 %v1085
        %1124 = vmatpush.msra.mxu0 %v1082
        %1125 = vmatpush.msra.mxu0 %v1079
        %1126 = vmatpush.msra.mxu0 %v1076
        %1127 = vmatpush.msra.mxu0 %v1073
        %1128 = vmatpush.msra.mxu0 %v1070
        %1129 = vmatpush.msra.mxu0 %v1067
        %1130 = vmatpush.msra.mxu0 %v1064
        %1131 = vmatpush.msra.mxu0 %v1061
        %1132 = vmatpush.msra.mxu0 %v1058
        %1133 = vmatpush.msra.mxu0 %v1055
        %1134 = vmatpush.msra.mxu0 %v1052
        %1135 = vmatpush.msra.mxu0 %v1049
        %1136 = vmatpush.msra.mxu0 %v1046
        %1137 = vmatmul.f32.gmra.mxu0 %v1039
        %v1138 = vpop.f32.mrf.mxu0
        %v1139 = vadd.f32 %v1096, %v1138
        %1140 = vdwg.mxu0
        %1141 = vmatpush.msra.mxu0 %v1092
        %1142 = vmatpush.msra.mxu0 %v1089
        %1143 = vmatpush.msra.mxu0 %v1086
        %1144 = vmatpush.msra.mxu0 %v1083
        %1145 = vmatpush.msra.mxu0 %v1080
        %1146 = vmatpush.msra.mxu0 %v1077
        %1147 = vmatpush.msra.mxu0 %v1074
        %1148 = vmatpush.msra.mxu0 %v1071
        %1149 = vmatpush.msra.mxu0 %v1068
        %1150 = vmatpush.msra.mxu0 %v1065
        %1151 = vmatpush.msra.mxu0 %v1062
        %1152 = vmatpush.msra.mxu0 %v1059
        %1153 = vmatpush.msra.mxu0 %v1056
        %1154 = vmatpush.msra.mxu0 %v1053
        %1155 = vmatpush.msra.mxu0 %v1050
        %1156 = vmatpush.msra.mxu0 %v1047
        %1157 = vmatmul.f32.gmra.mxu0 %v1039
        %v1158 = vpop.f32.mrf.mxu0
        %v1159 = vadd.f32 %v1097, %v1158
        %1160 = vdwg.mxu0
        %v1161 = vadd.f32 %v1044, %v1119
        %v1162 = vxor.u32 %v1161, 2147483648
        %v1163 = vmul.f32 %v1162, 1.442695
        %v1164 = vpow.pop %v1163
        %v1165 = vadd.f32 %v1164, 1.0
        %v1166 = vrcp.pop %v1165
        %v1167 = vmul.f32 %v1165, %v1166
        %v1168 = vsub.f32 1.0, %v1167
        %v1169 = vmul.f32 %v1166, %v1168
        %v1170 = vadd.f32 %v1166, %v1169
        %vm1171 = vweird.f32 %v1165
        %vm1172 = vweird.f32 %v1166
        %vm1173 = vmor %vm1171, %vm1172
        %v1174 = vsel %vm1173, %v1166, %v1170
        %v1175 = vand.u32 2147483647, %v1165
        %vm1176 = vcmp.eq.f32.partialorder %v1175, 8.507059e+37
        %v1177 = vand.u32 %v1165, 2147483648
        %v1178 = vor.u32 1.1754944e-38, %v1177
        %v1179 = vsel %vm1176, %v1178, %v1174
        %v1180 = vmul.f32 1.0, %v1179
        %v1182 = vrot.slane %v1044, 2
        %v1184 = vadd.f32 %v1182, %v1139
        %v1185 = vxor.u32 %v1184, 2147483648
        %v1186 = vmul.f32 %v1185, 1.442695
        %v1187 = vpow.pop %v1186
        %v1188 = vadd.f32 %v1187, 1.0
        %v1189 = vrcp.pop %v1188
        %v1190 = vmul.f32 %v1188, %v1189
        %v1191 = vsub.f32 1.0, %v1190
        %v1192 = vmul.f32 %v1189, %v1191
        %v1193 = vadd.f32 %v1189, %v1192
        %vm1194 = vweird.f32 %v1188
        %vm1195 = vweird.f32 %v1189
        %vm1196 = vmor %vm1194, %vm1195
        %v1197 = vsel %vm1196, %v1189, %v1193
        %v1198 = vand.u32 2147483647, %v1188
        %vm1199 = vcmp.eq.f32.partialorder %v1198, 8.507059e+37
        %v1200 = vand.u32 %v1188, 2147483648
        %v1201 = vor.u32 1.1754944e-38, %v1200
        %v1202 = vsel %vm1199, %v1201, %v1197
        %v1203 = vmul.f32 1.0, %v1202
        %v1204 = vmul.f32 %v1180, %v1159
        %v1205 = vrot.slane %v1044, 4
        %v1207 = vadd.f32 %v1205, %v1204
        %v1208 = vtanh.pop %v1207
        %v1209 = vsub.f32 1.0, %v1203
        %v1210 = vmul.f32 %v1209, %v1208
        %v1211 = vmul.f32 %v1203, %v1039
        %v1212 = vadd.f32 %v1210, %v1211
        %v1213 = vld [vmem:[%s0] sm:$0x3]
        %v1214 = vstv %s1040
        %vm1215 = vcmp.lt.s32.totalorder %v1214, %v1213
        %v1216 = vsel %vm1215, 1, 0
        %1217 = vset.pattern.permute.xlu0 0
        %1218 = vperm.xlu0 %1217, %v1216
        %v1219 = vpop.permute.xlu0 %1218
        %vm1220 = vcmp.eq.s32.totalorder %v1219, 1
        %v1221 = vsel %vm1220, %v1212, 0.0
        %s1222 = smul.u32 %s1040, 2
        %s1223 = scalar_lea.vmem %s295, %s1222 [#allocation8]
        %1224 = vst [vmem:[%s1223] sm:$0x3] %v1221
        %v1225 = vsel %vm1220, %v1212, %v1039
        %s1226 = scalar_select %p296, 2, 5
        %s1227 = smul.u32 %s1226, 3
        %s1228 = smul.addr %s1227, 2
        %s1229 = scalar_lea.vmem %s240, %s1228 [#allocation2]
        %v1230 = vld [vmem:[%s1229] sm:$0x3f]
        %v1231 = vld [vmem:[%s250] sm:$0xff]
        %v1232 = vld [vmem:[%s250 + $0x8] sm:$0xff]
        %v1233 = vld [vmem:[%s250 + $0x10] sm:$0xff]
        %v1234 = vld [vmem:[%s250 + $0x18] sm:$0xff]
        %v1235 = vld [vmem:[%s250 + $0x20] sm:$0xff]
        %v1236 = vld [vmem:[%s250 + $0x28] sm:$0xff]
        %v1237 = vld [vmem:[%s250 + $0x30] sm:$0xff]
        %v1238 = vld [vmem:[%s250 + $0x38] sm:$0xff]
        %v1239 = vld [vmem:[%s250 + $0x40] sm:$0xff]
        %v1240 = vld [vmem:[%s250 + $0x48] sm:$0xff]
        %v1241 = vld [vmem:[%s250 + $0x50] sm:$0xff]
        %v1242 = vld [vmem:[%s250 + $0x58] sm:$0xff]
        %v1243 = vld [vmem:[%s250 + $0x60] sm:$0xff]
        %v1244 = vld [vmem:[%s250 + $0x68] sm:$0xff]
        %v1245 = vld [vmem:[%s250 + $0x70] sm:$0xff]
        %v1246 = vld [vmem:[%s250 + $0x78] sm:$0xff]
        %v1247 = vld [vmem:[%s250 + $0x80] sm:$0xff]
        %v1248 = vld [vmem:[%s250 + $0x88] sm:$0xff]
        %v1249 = vld [vmem:[%s250 + $0x90] sm:$0xff]
        %v1250 = vld [vmem:[%s250 + $0x98] sm:$0xff]
        %v1251 = vld [vmem:[%s250 + $0xa0] sm:$0xff]
        %v1252 = vld [vmem:[%s250 + $0xa8] sm:$0xff]
        %v1253 = vld [vmem:[%s250 + $0xb0] sm:$0xff]
        %v1254 = vld [vmem:[%s250 + $0xb8] sm:$0xff]
        %v1255 = vld [vmem:[%s250 + $0xc0] sm:$0xff]
        %v1256 = vld [vmem:[%s250 + $0xc8] sm:$0xff]
        %v1257 = vld [vmem:[%s250 + $0xd0] sm:$0xff]
        %v1258 = vld [vmem:[%s250 + $0xd8] sm:$0xff]
        %v1259 = vld [vmem:[%s250 + $0xe0] sm:$0xff]
        %v1260 = vld [vmem:[%s250 + $0xe8] sm:$0xff]
        %v1261 = vld [vmem:[%s250 + $0xf0] sm:$0xff]
        %v1262 = vld [vmem:[%s250 + $0xf8] sm:$0xff]
        %v1263 = vld [vmem:[%s250 + $0x100] sm:$0xff]
        %v1264 = vld [vmem:[%s250 + $0x108] sm:$0xff]
        %v1265 = vld [vmem:[%s250 + $0x110] sm:$0xff]
        %v1266 = vld [vmem:[%s250 + $0x118] sm:$0xff]
        %v1267 = vld [vmem:[%s250 + $0x120] sm:$0xff]
        %v1268 = vld [vmem:[%s250 + $0x128] sm:$0xff]
        %v1269 = vld [vmem:[%s250 + $0x130] sm:$0xff]
        %v1270 = vld [vmem:[%s250 + $0x138] sm:$0xff]
        %v1271 = vld [vmem:[%s250 + $0x140] sm:$0xff]
        %v1272 = vld [vmem:[%s250 + $0x148] sm:$0xff]
        %v1273 = vld [vmem:[%s250 + $0x150] sm:$0xff]
        %v1274 = vld [vmem:[%s250 + $0x158] sm:$0xff]
        %v1275 = vld [vmem:[%s250 + $0x160] sm:$0xff]
        %v1276 = vld [vmem:[%s250 + $0x168] sm:$0xff]
        %v1277 = vld [vmem:[%s250 + $0x170] sm:$0xff]
        %v1278 = vld [vmem:[%s250 + $0x178] sm:$0xff]
        %v1279 = vld [vmem:[%s260] sm:$0x7]
        %v1281 = vperm.slane %v1279, 0
        %v1282 = vperm.slane %v1279, 1
        %v1283 = vperm.slane %v1279, 2
        %1287 = vmatpush.msra.mxu0 %v1276
        %1288 = vmatpush.msra.mxu0 %v1273
        %1289 = vmatpush.msra.mxu0 %v1270
        %1290 = vmatpush.msra.mxu0 %v1267
        %1291 = vmatpush.msra.mxu0 %v1264
        %1292 = vmatpush.msra.mxu0 %v1261
        %1293 = vmatpush.msra.mxu0 %v1258
        %1294 = vmatpush.msra.mxu0 %v1255
        %1295 = vmatpush.msra.mxu0 %v1252
        %1296 = vmatpush.msra.mxu0 %v1249
        %1297 = vmatpush.msra.mxu0 %v1246
        %1298 = vmatpush.msra.mxu0 %v1243
        %1299 = vmatpush.msra.mxu0 %v1240
        %1300 = vmatpush.msra.mxu0 %v1237
        %1301 = vmatpush.msra.mxu0 %v1234
        %1302 = vmatpush.msra.mxu0 %v1231
        %1303 = vmatmul.f32.gmra.mxu0 %v1225
        %v1304 = vpop.f32.mrf.mxu0
        %v1305 = vadd.f32 %v1281, %v1304
        %1306 = vdwg.mxu0
        %1307 = vmatpush.msra.mxu0 %v1277
        %1308 = vmatpush.msra.mxu0 %v1274
        %1309 = vmatpush.msra.mxu0 %v1271
        %1310 = vmatpush.msra.mxu0 %v1268
        %1311 = vmatpush.msra.mxu0 %v1265
        %1312 = vmatpush.msra.mxu0 %v1262
        %1313 = vmatpush.msra.mxu0 %v1259
        %1314 = vmatpush.msra.mxu0 %v1256
        %1315 = vmatpush.msra.mxu0 %v1253
        %1316 = vmatpush.msra.mxu0 %v1250
        %1317 = vmatpush.msra.mxu0 %v1247
        %1318 = vmatpush.msra.mxu0 %v1244
        %1319 = vmatpush.msra.mxu0 %v1241
        %1320 = vmatpush.msra.mxu0 %v1238
        %1321 = vmatpush.msra.mxu0 %v1235
        %1322 = vmatpush.msra.mxu0 %v1232
        %1323 = vmatmul.f32.gmra.mxu0 %v1225
        %v1324 = vpop.f32.mrf.mxu0
        %v1325 = vadd.f32 %v1282, %v1324
        %1326 = vdwg.mxu0
        %1327 = vmatpush.msra.mxu0 %v1278
        %1328 = vmatpush.msra.mxu0 %v1275
        %1329 = vmatpush.msra.mxu0 %v1272
        %1330 = vmatpush.msra.mxu0 %v1269
        %1331 = vmatpush.msra.mxu0 %v1266
        %1332 = vmatpush.msra.mxu0 %v1263
        %1333 = vmatpush.msra.mxu0 %v1260
        %1334 = vmatpush.msra.mxu0 %v1257
        %1335 = vmatpush.msra.mxu0 %v1254
        %1336 = vmatpush.msra.mxu0 %v1251
        %1337 = vmatpush.msra.mxu0 %v1248
        %1338 = vmatpush.msra.mxu0 %v1245
        %1339 = vmatpush.msra.mxu0 %v1242
        %1340 = vmatpush.msra.mxu0 %v1239
        %1341 = vmatpush.msra.mxu0 %v1236
        %1342 = vmatpush.msra.mxu0 %v1233
        %1343 = vmatmul.f32.gmra.mxu0 %v1225
        %v1344 = vpop.f32.mrf.mxu0
        %v1345 = vadd.f32 %v1283, %v1344
        %1346 = vdwg.mxu0
        %v1347 = vadd.f32 %v1230, %v1305
        %v1348 = vxor.u32 %v1347, 2147483648
        %v1349 = vmul.f32 %v1348, 1.442695
        %v1350 = vpow.pop %v1349
        %v1351 = vadd.f32 %v1350, 1.0
        %v1352 = vrcp.pop %v1351
        %v1353 = vmul.f32 %v1351, %v1352
        %v1354 = vsub.f32 1.0, %v1353
        %v1355 = vmul.f32 %v1352, %v1354
        %v1356 = vadd.f32 %v1352, %v1355
        %vm1357 = vweird.f32 %v1351
        %vm1358 = vweird.f32 %v1352
        %vm1359 = vmor %vm1357, %vm1358
        %v1360 = vsel %vm1359, %v1352, %v1356
        %v1361 = vand.u32 2147483647, %v1351
        %vm1362 = vcmp.eq.f32.partialorder %v1361, 8.507059e+37
        %v1363 = vand.u32 %v1351, 2147483648
        %v1364 = vor.u32 1.1754944e-38, %v1363
        %v1365 = vsel %vm1362, %v1364, %v1360
        %v1366 = vmul.f32 1.0, %v1365
        %v1368 = vrot.slane %v1230, 2
        %v1370 = vadd.f32 %v1368, %v1325
        %v1371 = vxor.u32 %v1370, 2147483648
        %v1372 = vmul.f32 %v1371, 1.442695
        %v1373 = vpow.pop %v1372
        %v1374 = vadd.f32 %v1373, 1.0
        %v1375 = vrcp.pop %v1374
        %v1376 = vmul.f32 %v1374, %v1375
        %v1377 = vsub.f32 1.0, %v1376
        %v1378 = vmul.f32 %v1375, %v1377
        %v1379 = vadd.f32 %v1375, %v1378
        %vm1380 = vweird.f32 %v1374
        %vm1381 = vweird.f32 %v1375
        %vm1382 = vmor %vm1380, %vm1381
        %v1383 = vsel %vm1382, %v1375, %v1379
        %v1384 = vand.u32 2147483647, %v1374
        %vm1385 = vcmp.eq.f32.partialorder %v1384, 8.507059e+37
        %v1386 = vand.u32 %v1374, 2147483648
        %v1387 = vor.u32 1.1754944e-38, %v1386
        %v1388 = vsel %vm1385, %v1387, %v1383
        %v1389 = vmul.f32 1.0, %v1388
        %v1390 = vmul.f32 %v1366, %v1345
        %v1391 = vrot.slane %v1230, 4
        %v1393 = vadd.f32 %v1391, %v1390
        %v1394 = vtanh.pop %v1393
        %v1395 = vsub.f32 1.0, %v1389
        %v1396 = vmul.f32 %v1395, %v1394
        %v1397 = vmul.f32 %v1389, %v1225
        %v1398 = vadd.f32 %v1396, %v1397
        %v1399 = vld [vmem:[%s0] sm:$0x3]
        %v1400 = vstv %s1226
        %vm1401 = vcmp.lt.s32.totalorder %v1400, %v1399
        %v1402 = vsel %vm1401, 1, 0
        %1403 = vset.pattern.permute.xlu0 0
        %1404 = vperm.xlu0 %1403, %v1402
        %v1405 = vpop.permute.xlu0 %1404
        %vm1406 = vcmp.eq.s32.totalorder %v1405, 1
        %v1407 = vsel %vm1406, %v1398, 0.0
        %s1408 = smul.u32 %s1226, 2
        %s1409 = scalar_lea.vmem %s295, %s1408 [#allocation8]
        %1410 = vst [vmem:[%s1409] sm:$0x3] %v1407
        %v1411 = vsel %vm1406, %v1398, %v1225
        %s1412 = scalar_select %p296, 1, 6
        %s1413 = smul.u32 %s1412, 3
        %s1414 = smul.addr %s1413, 2
        %s1415 = scalar_lea.vmem %s240, %s1414 [#allocation2]
        %v1416 = vld [vmem:[%s1415] sm:$0x3f]
        %v1417 = vld [vmem:[%s250] sm:$0xff]
        %v1418 = vld [vmem:[%s250 + $0x8] sm:$0xff]
        %v1419 = vld [vmem:[%s250 + $0x10] sm:$0xff]
        %v1420 = vld [vmem:[%s250 + $0x18] sm:$0xff]
        %v1421 = vld [vmem:[%s250 + $0x20] sm:$0xff]
        %v1422 = vld [vmem:[%s250 + $0x28] sm:$0xff]
        %v1423 = vld [vmem:[%s250 + $0x30] sm:$0xff]
        %v1424 = vld [vmem:[%s250 + $0x38] sm:$0xff]
        %v1425 = vld [vmem:[%s250 + $0x40] sm:$0xff]
        %v1426 = vld [vmem:[%s250 + $0x48] sm:$0xff]
        %v1427 = vld [vmem:[%s250 + $0x50] sm:$0xff]
        %v1428 = vld [vmem:[%s250 + $0x58] sm:$0xff]
        %v1429 = vld [vmem:[%s250 + $0x60] sm:$0xff]
        %v1430 = vld [vmem:[%s250 + $0x68] sm:$0xff]
        %v1431 = vld [vmem:[%s250 + $0x70] sm:$0xff]
        %v1432 = vld [vmem:[%s250 + $0x78] sm:$0xff]
        %v1433 = vld [vmem:[%s250 + $0x80] sm:$0xff]
        %v1434 = vld [vmem:[%s250 + $0x88] sm:$0xff]
        %v1435 = vld [vmem:[%s250 + $0x90] sm:$0xff]
        %v1436 = vld [vmem:[%s250 + $0x98] sm:$0xff]
        %v1437 = vld [vmem:[%s250 + $0xa0] sm:$0xff]
        %v1438 = vld [vmem:[%s250 + $0xa8] sm:$0xff]
        %v1439 = vld [vmem:[%s250 + $0xb0] sm:$0xff]
        %v1440 = vld [vmem:[%s250 + $0xb8] sm:$0xff]
        %v1441 = vld [vmem:[%s250 + $0xc0] sm:$0xff]
        %v1442 = vld [vmem:[%s250 + $0xc8] sm:$0xff]
        %v1443 = vld [vmem:[%s250 + $0xd0] sm:$0xff]
        %v1444 = vld [vmem:[%s250 + $0xd8] sm:$0xff]
        %v1445 = vld [vmem:[%s250 + $0xe0] sm:$0xff]
        %v1446 = vld [vmem:[%s250 + $0xe8] sm:$0xff]
        %v1447 = vld [vmem:[%s250 + $0xf0] sm:$0xff]
        %v1448 = vld [vmem:[%s250 + $0xf8] sm:$0xff]
        %v1449 = vld [vmem:[%s250 + $0x100] sm:$0xff]
        %v1450 = vld [vmem:[%s250 + $0x108] sm:$0xff]
        %v1451 = vld [vmem:[%s250 + $0x110] sm:$0xff]
        %v1452 = vld [vmem:[%s250 + $0x118] sm:$0xff]
        %v1453 = vld [vmem:[%s250 + $0x120] sm:$0xff]
        %v1454 = vld [vmem:[%s250 + $0x128] sm:$0xff]
        %v1455 = vld [vmem:[%s250 + $0x130] sm:$0xff]
        %v1456 = vld [vmem:[%s250 + $0x138] sm:$0xff]
        %v1457 = vld [vmem:[%s250 + $0x140] sm:$0xff]
        %v1458 = vld [vmem:[%s250 + $0x148] sm:$0xff]
        %v1459 = vld [vmem:[%s250 + $0x150] sm:$0xff]
        %v1460 = vld [vmem:[%s250 + $0x158] sm:$0xff]
        %v1461 = vld [vmem:[%s250 + $0x160] sm:$0xff]
        %v1462 = vld [vmem:[%s250 + $0x168] sm:$0xff]
        %v1463 = vld [vmem:[%s250 + $0x170] sm:$0xff]
        %v1464 = vld [vmem:[%s250 + $0x178] sm:$0xff]
        %v1465 = vld [vmem:[%s260] sm:$0x7]
        %v1467 = vperm.slane %v1465, 0
        %v1468 = vperm.slane %v1465, 1
        %v1469 = vperm.slane %v1465, 2
        %1473 = vmatpush.msra.mxu0 %v1462
        %1474 = vmatpush.msra.mxu0 %v1459
        %1475 = vmatpush.msra.mxu0 %v1456
        %1476 = vmatpush.msra.mxu0 %v1453
        %1477 = vmatpush.msra.mxu0 %v1450
        %1478 = vmatpush.msra.mxu0 %v1447
        %1479 = vmatpush.msra.mxu0 %v1444
        %1480 = vmatpush.msra.mxu0 %v1441
        %1481 = vmatpush.msra.mxu0 %v1438
        %1482 = vmatpush.msra.mxu0 %v1435
        %1483 = vmatpush.msra.mxu0 %v1432
        %1484 = vmatpush.msra.mxu0 %v1429
        %1485 = vmatpush.msra.mxu0 %v1426
        %1486 = vmatpush.msra.mxu0 %v1423
        %1487 = vmatpush.msra.mxu0 %v1420
        %1488 = vmatpush.msra.mxu0 %v1417
        %1489 = vmatmul.f32.gmra.mxu0 %v1411
        %v1490 = vpop.f32.mrf.mxu0
        %v1491 = vadd.f32 %v1467, %v1490
        %1492 = vdwg.mxu0
        %1493 = vmatpush.msra.mxu0 %v1463
        %1494 = vmatpush.msra.mxu0 %v1460
        %1495 = vmatpush.msra.mxu0 %v1457
        %1496 = vmatpush.msra.mxu0 %v1454
        %1497 = vmatpush.msra.mxu0 %v1451
        %1498 = vmatpush.msra.mxu0 %v1448
        %1499 = vmatpush.msra.mxu0 %v1445
        %1500 = vmatpush.msra.mxu0 %v1442
        %1501 = vmatpush.msra.mxu0 %v1439
        %1502 = vmatpush.msra.mxu0 %v1436
        %1503 = vmatpush.msra.mxu0 %v1433
        %1504 = vmatpush.msra.mxu0 %v1430
        %1505 = vmatpush.msra.mxu0 %v1427
        %1506 = vmatpush.msra.mxu0 %v1424
        %1507 = vmatpush.msra.mxu0 %v1421
        %1508 = vmatpush.msra.mxu0 %v1418
        %1509 = vmatmul.f32.gmra.mxu0 %v1411
        %v1510 = vpop.f32.mrf.mxu0
        %v1511 = vadd.f32 %v1468, %v1510
        %1512 = vdwg.mxu0
        %1513 = vmatpush.msra.mxu0 %v1464
        %1514 = vmatpush.msra.mxu0 %v1461
        %1515 = vmatpush.msra.mxu0 %v1458
        %1516 = vmatpush.msra.mxu0 %v1455
        %1517 = vmatpush.msra.mxu0 %v1452
        %1518 = vmatpush.msra.mxu0 %v1449
        %1519 = vmatpush.msra.mxu0 %v1446
        %1520 = vmatpush.msra.mxu0 %v1443
        %1521 = vmatpush.msra.mxu0 %v1440
        %1522 = vmatpush.msra.mxu0 %v1437
        %1523 = vmatpush.msra.mxu0 %v1434
        %1524 = vmatpush.msra.mxu0 %v1431
        %1525 = vmatpush.msra.mxu0 %v1428
        %1526 = vmatpush.msra.mxu0 %v1425
        %1527 = vmatpush.msra.mxu0 %v1422
        %1528 = vmatpush.msra.mxu0 %v1419
        %1529 = vmatmul.f32.gmra.mxu0 %v1411
        %v1530 = vpop.f32.mrf.mxu0
        %v1531 = vadd.f32 %v1469, %v1530
        %1532 = vdwg.mxu0
        %v1533 = vadd.f32 %v1416, %v1491
        %v1534 = vxor.u32 %v1533, 2147483648
        %v1535 = vmul.f32 %v1534, 1.442695
        %v1536 = vpow.pop %v1535
        %v1537 = vadd.f32 %v1536, 1.0
        %v1538 = vrcp.pop %v1537
        %v1539 = vmul.f32 %v1537, %v1538
        %v1540 = vsub.f32 1.0, %v1539
        %v1541 = vmul.f32 %v1538, %v1540
        %v1542 = vadd.f32 %v1538, %v1541
        %vm1543 = vweird.f32 %v1537
        %vm1544 = vweird.f32 %v1538
        %vm1545 = vmor %vm1543, %vm1544
        %v1546 = vsel %vm1545, %v1538, %v1542
        %v1547 = vand.u32 2147483647, %v1537
        %vm1548 = vcmp.eq.f32.partialorder %v1547, 8.507059e+37
        %v1549 = vand.u32 %v1537, 2147483648
        %v1550 = vor.u32 1.1754944e-38, %v1549
        %v1551 = vsel %vm1548, %v1550, %v1546
        %v1552 = vmul.f32 1.0, %v1551
        %v1554 = vrot.slane %v1416, 2
        %v1556 = vadd.f32 %v1554, %v1511
        %v1557 = vxor.u32 %v1556, 2147483648
        %v1558 = vmul.f32 %v1557, 1.442695
        %v1559 = vpow.pop %v1558
        %v1560 = vadd.f32 %v1559, 1.0
        %v1561 = vrcp.pop %v1560
        %v1562 = vmul.f32 %v1560, %v1561
        %v1563 = vsub.f32 1.0, %v1562
        %v1564 = vmul.f32 %v1561, %v1563
        %v1565 = vadd.f32 %v1561, %v1564
        %vm1566 = vweird.f32 %v1560
        %vm1567 = vweird.f32 %v1561
        %vm1568 = vmor %vm1566, %vm1567
        %v1569 = vsel %vm1568, %v1561, %v1565
        %v1570 = vand.u32 2147483647, %v1560
        %vm1571 = vcmp.eq.f32.partialorder %v1570, 8.507059e+37
        %v1572 = vand.u32 %v1560, 2147483648
        %v1573 = vor.u32 1.1754944e-38, %v1572
        %v1574 = vsel %vm1571, %v1573, %v1569
        %v1575 = vmul.f32 1.0, %v1574
        %v1576 = vmul.f32 %v1552, %v1531
        %v1577 = vrot.slane %v1416, 4
        %v1579 = vadd.f32 %v1577, %v1576
        %v1580 = vtanh.pop %v1579
        %v1581 = vsub.f32 1.0, %v1575
        %v1582 = vmul.f32 %v1581, %v1580
        %v1583 = vmul.f32 %v1575, %v1411
        %v1584 = vadd.f32 %v1582, %v1583
        %v1585 = vld [vmem:[%s0] sm:$0x3]
        %v1586 = vstv %s1412
        %vm1587 = vcmp.lt.s32.totalorder %v1586, %v1585
        %v1588 = vsel %vm1587, 1, 0
        %1589 = vset.pattern.permute.xlu0 0
        %1590 = vperm.xlu0 %1589, %v1588
        %v1591 = vpop.permute.xlu0 %1590
        %vm1592 = vcmp.eq.s32.totalorder %v1591, 1
        %v1593 = vsel %vm1592, %v1584, 0.0
        %s1594 = smul.u32 %s1412, 2
        %s1595 = scalar_lea.vmem %s295, %s1594 [#allocation8]
        %1596 = vst [vmem:[%s1595] sm:$0x3] %v1593
        %v1597 = vsel %vm1592, %v1584, %v1411
        %s1598 = scalar_select %p296, 0, 7
        %s1599 = smul.u32 %s1598, 3
        %s1600 = smul.addr %s1599, 2
        %s1601 = scalar_lea.vmem %s240, %s1600 [#allocation2]
        %v1602 = vld [vmem:[%s1601] sm:$0x3f]
        %v1603 = vld [vmem:[%s250] sm:$0xff]
        %v1604 = vld [vmem:[%s250 + $0x8] sm:$0xff]
        %v1605 = vld [vmem:[%s250 + $0x10] sm:$0xff]
        %v1606 = vld [vmem:[%s250 + $0x18] sm:$0xff]
        %v1607 = vld [vmem:[%s250 + $0x20] sm:$0xff]
        %v1608 = vld [vmem:[%s250 + $0x28] sm:$0xff]
        %v1609 = vld [vmem:[%s250 + $0x30] sm:$0xff]
        %v1610 = vld [vmem:[%s250 + $0x38] sm:$0xff]
        %v1611 = vld [vmem:[%s250 + $0x40] sm:$0xff]
        %v1612 = vld [vmem:[%s250 + $0x48] sm:$0xff]
        %v1613 = vld [vmem:[%s250 + $0x50] sm:$0xff]
        %v1614 = vld [vmem:[%s250 + $0x58] sm:$0xff]
        %v1615 = vld [vmem:[%s250 + $0x60] sm:$0xff]
        %v1616 = vld [vmem:[%s250 + $0x68] sm:$0xff]
        %v1617 = vld [vmem:[%s250 + $0x70] sm:$0xff]
        %v1618 = vld [vmem:[%s250 + $0x78] sm:$0xff]
        %v1619 = vld [vmem:[%s250 + $0x80] sm:$0xff]
        %v1620 = vld [vmem:[%s250 + $0x88] sm:$0xff]
        %v1621 = vld [vmem:[%s250 + $0x90] sm:$0xff]
        %v1622 = vld [vmem:[%s250 + $0x98] sm:$0xff]
        %v1623 = vld [vmem:[%s250 + $0xa0] sm:$0xff]
        %v1624 = vld [vmem:[%s250 + $0xa8] sm:$0xff]
        %v1625 = vld [vmem:[%s250 + $0xb0] sm:$0xff]
        %v1626 = vld [vmem:[%s250 + $0xb8] sm:$0xff]
        %v1627 = vld [vmem:[%s250 + $0xc0] sm:$0xff]
        %v1628 = vld [vmem:[%s250 + $0xc8] sm:$0xff]
        %v1629 = vld [vmem:[%s250 + $0xd0] sm:$0xff]
        %v1630 = vld [vmem:[%s250 + $0xd8] sm:$0xff]
        %v1631 = vld [vmem:[%s250 + $0xe0] sm:$0xff]
        %v1632 = vld [vmem:[%s250 + $0xe8] sm:$0xff]
        %v1633 = vld [vmem:[%s250 + $0xf0] sm:$0xff]
        %v1634 = vld [vmem:[%s250 + $0xf8] sm:$0xff]
        %v1635 = vld [vmem:[%s250 + $0x100] sm:$0xff]
        %v1636 = vld [vmem:[%s250 + $0x108] sm:$0xff]
        %v1637 = vld [vmem:[%s250 + $0x110] sm:$0xff]
        %v1638 = vld [vmem:[%s250 + $0x118] sm:$0xff]
        %v1639 = vld [vmem:[%s250 + $0x120] sm:$0xff]
        %v1640 = vld [vmem:[%s250 + $0x128] sm:$0xff]
        %v1641 = vld [vmem:[%s250 + $0x130] sm:$0xff]
        %v1642 = vld [vmem:[%s250 + $0x138] sm:$0xff]
        %v1643 = vld [vmem:[%s250 + $0x140] sm:$0xff]
        %v1644 = vld [vmem:[%s250 + $0x148] sm:$0xff]
        %v1645 = vld [vmem:[%s250 + $0x150] sm:$0xff]
        %v1646 = vld [vmem:[%s250 + $0x158] sm:$0xff]
        %v1647 = vld [vmem:[%s250 + $0x160] sm:$0xff]
        %v1648 = vld [vmem:[%s250 + $0x168] sm:$0xff]
        %v1649 = vld [vmem:[%s250 + $0x170] sm:$0xff]
        %v1650 = vld [vmem:[%s250 + $0x178] sm:$0xff]
        %v1651 = vld [vmem:[%s260] sm:$0x7]
        %v1653 = vperm.slane %v1651, 0
        %v1654 = vperm.slane %v1651, 1
        %v1655 = vperm.slane %v1651, 2
        %1659 = vmatpush.msra.mxu0 %v1648
        %1660 = vmatpush.msra.mxu0 %v1645
        %1661 = vmatpush.msra.mxu0 %v1642
        %1662 = vmatpush.msra.mxu0 %v1639
        %1663 = vmatpush.msra.mxu0 %v1636
        %1664 = vmatpush.msra.mxu0 %v1633
        %1665 = vmatpush.msra.mxu0 %v1630
        %1666 = vmatpush.msra.mxu0 %v1627
        %1667 = vmatpush.msra.mxu0 %v1624
        %1668 = vmatpush.msra.mxu0 %v1621
        %1669 = vmatpush.msra.mxu0 %v1618
        %1670 = vmatpush.msra.mxu0 %v1615
        %1671 = vmatpush.msra.mxu0 %v1612
        %1672 = vmatpush.msra.mxu0 %v1609
        %1673 = vmatpush.msra.mxu0 %v1606
        %1674 = vmatpush.msra.mxu0 %v1603
        %1675 = vmatmul.f32.gmra.mxu0 %v1597
        %v1676 = vpop.f32.mrf.mxu0
        %v1677 = vadd.f32 %v1653, %v1676
        %1678 = vdwg.mxu0
        %1679 = vmatpush.msra.mxu0 %v1649
        %1680 = vmatpush.msra.mxu0 %v1646
        %1681 = vmatpush.msra.mxu0 %v1643
        %1682 = vmatpush.msra.mxu0 %v1640
        %1683 = vmatpush.msra.mxu0 %v1637
        %1684 = vmatpush.msra.mxu0 %v1634
        %1685 = vmatpush.msra.mxu0 %v1631
        %1686 = vmatpush.msra.mxu0 %v1628
        %1687 = vmatpush.msra.mxu0 %v1625
        %1688 = vmatpush.msra.mxu0 %v1622
        %1689 = vmatpush.msra.mxu0 %v1619
        %1690 = vmatpush.msra.mxu0 %v1616
        %1691 = vmatpush.msra.mxu0 %v1613
        %1692 = vmatpush.msra.mxu0 %v1610
        %1693 = vmatpush.msra.mxu0 %v1607
        %1694 = vmatpush.msra.mxu0 %v1604
        %1695 = vmatmul.f32.gmra.mxu0 %v1597
        %v1696 = vpop.f32.mrf.mxu0
        %v1697 = vadd.f32 %v1654, %v1696
        %1698 = vdwg.mxu0
        %1699 = vmatpush.msra.mxu0 %v1650
        %1700 = vmatpush.msra.mxu0 %v1647
        %1701 = vmatpush.msra.mxu0 %v1644
        %1702 = vmatpush.msra.mxu0 %v1641
        %1703 = vmatpush.msra.mxu0 %v1638
        %1704 = vmatpush.msra.mxu0 %v1635
        %1705 = vmatpush.msra.mxu0 %v1632
        %1706 = vmatpush.msra.mxu0 %v1629
        %1707 = vmatpush.msra.mxu0 %v1626
        %1708 = vmatpush.msra.mxu0 %v1623
        %1709 = vmatpush.msra.mxu0 %v1620
        %1710 = vmatpush.msra.mxu0 %v1617
        %1711 = vmatpush.msra.mxu0 %v1614
        %1712 = vmatpush.msra.mxu0 %v1611
        %1713 = vmatpush.msra.mxu0 %v1608
        %1714 = vmatpush.msra.mxu0 %v1605
        %1715 = vmatmul.f32.gmra.mxu0 %v1597
        %v1716 = vpop.f32.mrf.mxu0
        %v1717 = vadd.f32 %v1655, %v1716
        %1718 = vdwg.mxu0
        %v1719 = vadd.f32 %v1602, %v1677
        %v1720 = vxor.u32 %v1719, 2147483648
        %v1721 = vmul.f32 %v1720, 1.442695
        %v1722 = vpow.pop %v1721
        %v1723 = vadd.f32 %v1722, 1.0
        %v1724 = vrcp.pop %v1723
        %v1725 = vmul.f32 %v1723, %v1724
        %v1726 = vsub.f32 1.0, %v1725
        %v1727 = vmul.f32 %v1724, %v1726
        %v1728 = vadd.f32 %v1724, %v1727
        %vm1729 = vweird.f32 %v1723
        %vm1730 = vweird.f32 %v1724
        %vm1731 = vmor %vm1729, %vm1730
        %v1732 = vsel %vm1731, %v1724, %v1728
        %v1733 = vand.u32 2147483647, %v1723
        %vm1734 = vcmp.eq.f32.partialorder %v1733, 8.507059e+37
        %v1735 = vand.u32 %v1723, 2147483648
        %v1736 = vor.u32 1.1754944e-38, %v1735
        %v1737 = vsel %vm1734, %v1736, %v1732
        %v1738 = vmul.f32 1.0, %v1737
        %v1740 = vrot.slane %v1602, 2
        %v1742 = vadd.f32 %v1740, %v1697
        %v1743 = vxor.u32 %v1742, 2147483648
        %v1744 = vmul.f32 %v1743, 1.442695
        %v1745 = vpow.pop %v1744
        %v1746 = vadd.f32 %v1745, 1.0
        %v1747 = vrcp.pop %v1746
        %v1748 = vmul.f32 %v1746, %v1747
        %v1749 = vsub.f32 1.0, %v1748
        %v1750 = vmul.f32 %v1747, %v1749
        %v1751 = vadd.f32 %v1747, %v1750
        %vm1752 = vweird.f32 %v1746
        %vm1753 = vweird.f32 %v1747
        %vm1754 = vmor %vm1752, %vm1753
        %v1755 = vsel %vm1754, %v1747, %v1751
        %v1756 = vand.u32 2147483647, %v1746
        %vm1757 = vcmp.eq.f32.partialorder %v1756, 8.507059e+37
        %v1758 = vand.u32 %v1746, 2147483648
        %v1759 = vor.u32 1.1754944e-38, %v1758
        %v1760 = vsel %vm1757, %v1759, %v1755
        %v1761 = vmul.f32 1.0, %v1760
        %v1762 = vmul.f32 %v1738, %v1717
        %v1763 = vrot.slane %v1602, 4
        %v1765 = vadd.f32 %v1763, %v1762
        %v1766 = vtanh.pop %v1765
        %v1767 = vsub.f32 1.0, %v1761
        %v1768 = vmul.f32 %v1767, %v1766
        %v1769 = vmul.f32 %v1761, %v1597
        %v1770 = vadd.f32 %v1768, %v1769
        %v1771 = vld [vmem:[%s0] sm:$0x3]
        %v1772 = vstv %s1598
        %vm1773 = vcmp.lt.s32.totalorder %v1772, %v1771
        %v1774 = vsel %vm1773, 1, 0
        %1775 = vset.pattern.permute.xlu0 0
        %1776 = vperm.xlu0 %1775, %v1774
        %v1777 = vpop.permute.xlu0 %1776
        %vm1778 = vcmp.eq.s32.totalorder %v1777, 1
        %v1779 = vsel %vm1778, %v1770, 0.0
        %s1780 = smul.u32 %s1598, 2
        %s1781 = scalar_lea.vmem %s295, %s1780 [#allocation8]
        %1782 = vst [vmem:[%s1781] sm:$0x3] %v1779
        %s1783 = sand.u32 %s131, 1
        %s1784 = scalar_lea.sflag [#allocation4], %s1783
        %s1785 = sand.u32 %s131, 1
        %s1786 = smul.addr %s1785, 16
        %s1787 = scalar_lea.vmem [#allocation8], %s1786
        // Predicated region
        $region49: #{tpu_custom_call.1} parent=35 // pred_check
          %p1788 = pneg %p141
        $region50: #{tpu_custom_call.1} parent=35 // pred_check_branch
          %1790 = sbr.rel (%p1788) target = $region52
        $region51: #{tpu_custom_call.1} parent=35 // pred_region
          %1792 = vsyncadd %s1784, 0
          %s1793 = smul.addr %s24, 8
          %s1794 = smul.addr %s1793, 2
          %s1795 = scalar_lea.hbm %s4, %s1794
          %s1796 = sshll.u32 %s1787, 4
          %s1797 = int_to_ptr.vmem [resolvable:$true] %s1796
          %s1798 = sshll.u32 %s1795, 4
          %s1799 = int_to_ptr.hbm [resolvable:$true] %s1798
          %1804 = dma.vmem_to_hbm [thread:$0]  %s1797, 256, %s1799, %s1784, 32, 32, 2
        $region52: #{tpu_custom_call.1} parent=35 // pred_fallthru
          _
      $region36: #{tpu_custom_call.1} parent=5 // pred_fallthru
        _
      %p1805 = scmp.le.s32.totalorder 2, %s19
      // Predicated region
      $region53: #{tpu_custom_call.1} parent=5 // pred_check
        %p1806 = pneg %p1805
      $region54: #{tpu_custom_call.1} parent=5 // pred_check_branch
        %1808 = sbr.rel (%p1806) target = $region56
      $region55: #{tpu_custom_call.1} parent=5 // pred_region
        %s1809 = ssub.s32 %s19, 2
        // Predicated region
        $region57: #{tpu_custom_call.1} parent=55 // pred_check
          %p1810 = pneg %p147
        $region58: #{tpu_custom_call.1} parent=55 // pred_check_branch
          %1812 = sbr.rel (%p1810) target = $region60
        $region59: #{tpu_custom_call.1} parent=55 // pred_region
          %s1813 = sand.u32 %s132, 1
          %s1814 = scalar_lea.sflag [#allocation4], %s1813
          %s1815 = sand.u32 %s132, 1
          %s1816 = smul.addr %s1815, 16
          %s1817 = scalar_lea.vmem [#allocation8], %s1816
          %1819 = dma.done %s1814, 256
        $region60: #{tpu_custom_call.1} parent=55 // pred_fallthru
          _
      $region56: #{tpu_custom_call.1} parent=5 // pred_fallthru
        _
    $region6: #{tpu_custom_call.1} parent=1 // loop_footer
      %s23 = sadd.s32 1, %s19
    $region7: #{tpu_custom_call.1} parent=1 // loop_footer_branch
      %18 = sbr.rel target = $region3
    $region8: #{tpu_custom_call.1} parent=1 // loop_exit
      _
    %1820 = vsyncpa [#allocation3], 1
    %s1821 = scalar_lea.sflag [#allocation3], 1
    %1822 = vsyncpa %s1821, 1
    %1823 = vsyncpa [#allocation6], 1
    %s1824 = scalar_lea.sflag [#allocation6], 1
    %1825 = vsyncpa %s1824, 1
    %1826 = vsyncpa [#allocation4], 1
    %s1827 = scalar_lea.sflag [#allocation4], 1
    %1828 = vsyncpa %s1827, 1

</llo_original>
